<compile_context>
chip_gen: v7x
topology: tpu7x:2x2x1
jax: 0.10.0
libtpu: 0.0.40
codegen_flags: <defaults>
</compile_context>

<pallas_src>
import math
import jax
import jax.numpy as jnp
from jax.experimental import pallas as pl
from jax.experimental.pallas import tpu as pltpu

# ------------- config (stand-ins for cfg.getint / tokenizer vocab) -------------
VOCAB_SIZE  = 100          # tokenizer.get_vocab_size()
VOCAB_PAD   = 128          # lane-padded vocab for the in-kernel one-hot gather
EMB_DIM     = 32           # cfg['model']['emb_dim']
NUM_HEADS   = 4            # cfg['model']['num_heads']
D_K         = EMB_DIM      # EncoderLayer(d_k=emb_dim)
D_V         = EMB_DIM      # EncoderLayer(d_v=emb_dim)
FF_DIM      = 64           # cfg['model']['feedforw_dim']
NUM_LAYERS  = 2            # cfg['model']['num_layers']
MAX_LEN     = 8            # cfg['data']['max_len']
NUM_CLASSES = 3
BATCH       = 2
C_PAD       = 128          # lane-padded logits width (real logits in first NUM_CLASSES lanes)
LN_EPS      = 1e-6         # jadore LayerNorm(d_model, eps=1e-6)
SQRT_D      = math.sqrt(EMB_DIM)
TEMP        = math.sqrt(D_K)
HDK         = NUM_HEADS * D_K     # 128
HDV         = NUM_HEADS * D_V     # 128
BS          = BATCH * MAX_LEN     # 16 rows of the collapsed (batch*seq, D) activations
LANES       = 128

assert HDK == LANES and HDV == LANES and FF_DIM <= LANES
assert VOCAB_SIZE <= VOCAB_PAD == LANES and NUM_CLASSES <= C_PAD == LANES

# ---------------- bf16 weight-slab row offsets (all blocks are (EMB_DIM, 128)) ----------------
W_EMB       = 0                                   # emb^T * sqrt(D)      (D, VOCAB_PAD)
W_LAYER     = W_EMB + EMB_DIM
WQ, WK, WV  = 0, EMB_DIM, 2 * EMB_DIM             # (D, H*Dk) each; Wq,bq pre-scaled by 1/TEMP
WO          = 3 * EMB_DIM                         # Wo^T  (D, H*Dv)
WF1         = 4 * EMB_DIM                         # W1    (D, FF) lane-padded
WF2         = 5 * EMB_DIM                         # W2^T  (D, FF) lane-padded
W_PER_LAYER = 6 * EMB_DIM
W_CLS       = W_LAYER + NUM_LAYERS * W_PER_LAYER  # Wcls  (D, C_PAD)
W_ROWS      = W_CLS + EMB_DIM                     # 448

# ---------------- f32 constant-slab row offsets ----------------
C_PE        = 0                    # batch-tiled positional encoding   (BS, D)
C_AMASK     = C_PE + BS            # additive batch-block mask         (BS, BS)
C_POOL      = C_AMASK + BS         # mean-pool matrix                  (BATCH, BS)
C_HMASK     = C_POOL + 8           # per-head lane masks               (NUM_HEADS, 128)
C_BCLS      = C_HMASK + 8          # classifier bias                   (1, C_PAD)
C_LAYER     = C_BCLS + 8           # per-layer bias / LN rows
(CB_BQ, CB_BK, CB_BV, CB_BO, CB_LN1G, CB_LN1B,
 CB_B1, CB_B2, CB_LN2G, CB_LN2B) = range(10)
C_PER_LAYER = 16
C_ROWS      = C_LAYER + NUM_LAYERS * C_PER_LAYER  # 88


def _layer_norm(x, g, b):
    mu = jnp.mean(x, axis=-1, keepdims=True)
    var = jnp.mean((x - mu) ** 2, axis=-1, keepdims=True)
    return (x - mu) * jax.lax.rsqrt(var + LN_EPS) * g + b


def _nt_dot(a, b):
    """a @ b.T (contraction on the last dim of both) with f32 accumulation."""
    return jax.lax.dot_general(a, b, (((1,), (1,)), ((), ())),
                               preferred_element_type=jnp.float32)


def transformer_kernel(onehot_ref, w_ref, c_ref, out_ref):
    f32, bf16 = jnp.float32, jnp.bfloat16

    # ---- embedding gather: one-hot (BS,128) x emb^T (D,128) -> (BS, D), scale pre-folded ----
    x = _nt_dot(onehot_ref[...], w_ref[W_EMB:W_EMB + EMB_DIM, :])
    x = x + c_ref[C_PE:C_PE + BS, :EMB_DIM]                     # + positional encoding (f32)

    amask = c_ref[C_AMASK:C_AMASK + BS, :BS]                    # (BS,BS) 0 / -1e30 additive mask

    for l in range(NUM_LAYERS):                                 # static unroll
        wb = W_LAYER + l * W_PER_LAYER
        cb = C_LAYER + l * C_PER_LAYER

        # ---------------- multi-head self-attention (post-LN, jadore EncoderLayer) ----------------
        residual = x
        xb = x.astype(bf16)
        q = jnp.dot(xb, w_ref[wb + WQ:wb + WQ + EMB_DIM, :],
                    preferred_element_type=f32) + c_ref[cb + CB_BQ:cb + CB_BQ + 1, :]
        k = jnp.dot(xb, w_ref[wb + WK:wb + WK + EMB_DIM, :],
                    preferred_element_type=f32) + c_ref[cb + CB_BK:cb + CB_BK + 1, :]
        v = jnp.dot(xb, w_ref[wb + WV:wb + WV + EMB_DIM, :],
                    preferred_element_type=f32) + c_ref[cb + CB_BV:cb + CB_BV + 1, :]
        kb = k.astype(bf16)

        # heads stay on lanes; per head: lane-mask (VPU) + (16,16) scores + small softmax,
        # context accumulated directly in the (BS, H*Dv) lane layout (no lane slicing/concat).
        ctx = jnp.zeros((BS, HDV), f32)
        for h in range(NUM_HEADS):
            hm = c_ref[C_HMASK + h:C_HMASK + h + 1, :]          # (1,128) lane mask for head h
            s = _nt_dot((q * hm).astype(bf16), kb) + amask      # (BS,BS); 1/sqrt(dk) folded in Wq
            s = s - jnp.max(s, axis=-1, keepdims=True)
            p = jnp.exp(s)
            p = p * pl.reciprocal(jnp.sum(p, axis=-1, keepdims=True), approx=True)
            ctx = ctx + jnp.dot(p.astype(bf16), (v * hm).astype(bf16),
                                preferred_element_type=f32)     # (BS, H*Dv)

        attn = _nt_dot(ctx.astype(bf16), w_ref[wb + WO:wb + WO + EMB_DIM, :]) \
            + c_ref[cb + CB_BO:cb + CB_BO + 1, :EMB_DIM]        # (BS, D)
        x = _layer_norm(attn + residual,
                        c_ref[cb + CB_LN1G:cb + CB_LN1G + 1, :EMB_DIM],
                        c_ref[cb + CB_LN1B:cb + CB_LN1B + 1, :EMB_DIM])

        # ---------------- position-wise feed-forward ----------------
        residual = x
        h1 = jnp.dot(x.astype(bf16), w_ref[wb + WF1:wb + WF1 + EMB_DIM, :],
                     preferred_element_type=f32) + c_ref[cb + CB_B1:cb + CB_B1 + 1, :]
        h1 = jnp.maximum(h1, 0.0)                               # lanes >= FF stay exactly 0
        o = _nt_dot(h1.astype(bf16), w_ref[wb + WF2:wb + WF2 + EMB_DIM, :]) \
            + c_ref[cb + CB_B2:cb + CB_B2 + 1, :EMB_DIM]
        x = _layer_norm(o + residual,
                        c_ref[cb + CB_LN2G:cb + CB_LN2G + 1, :EMB_DIM],
                        c_ref[cb + CB_LN2B:cb + CB_LN2B + 1, :EMB_DIM])

    # ---------------- mean pool (precomputed matrix) + classifier, one lane-dense store ----------------
    pool = c_ref[C_POOL:C_POOL + BATCH, :BS]                    # (B, BS), entries 1/MAX_LEN
    pooled = jnp.dot(pool.astype(bf16), x.astype(bf16), preferred_element_type=f32)   # (B, D)
    logits = jnp.dot(pooled.astype(bf16), w_ref[W_CLS:W_CLS + EMB_DIM, :],
                     preferred_element_type=f32)                # (B, C_PAD)
    out_ref[...] = logits + c_ref[C_BCLS:C_BCLS + 1, :]


def _cost_estimate():
    per_layer = (3 * 2 * BS * EMB_DIM * HDK
                 + NUM_HEADS * (2 * BS * HDK * BS + 2 * BS * BS * HDV)
                 + 2 * BS * HDV * EMB_DIM
                 + 2 * BS * EMB_DIM * LANES + 2 * BS * LANES * EMB_DIM)
    flops = (2 * BS * VOCAB_PAD * EMB_DIM + NUM_LAYERS * per_layer
             + 2 * BATCH * BS * EMB_DIM + 2 * BATCH * EMB_DIM * C_PAD)
    trans = NUM_LAYERS * (NUM_HEADS * BS * BS + NUM_HEADS * BS + 2 * BS)
    bytes_accessed = (BS * VOCAB_PAD * 2 + W_ROWS * LANES * 2
                      + C_ROWS * LANES * 4 + BATCH * C_PAD * 4)
    return pl.CostEstimate(flops=int(flops), transcendentals=int(trans),
                           bytes_accessed=int(bytes_accessed))


@jax.jit
def transformer_classifier(texts, kp):
    """texts: (B, S) int32 token ids -> (B, NUM_CLASSES) float32 logits."""
    B_, S_ = texts.shape
    assert B_ == BATCH and S_ == MAX_LEN, "kernel is specialised to (BATCH, MAX_LEN)"
    # one-hot built host/XLA-side (jitted with the kernel): bf16 is exact for 0/1 values
    onehot = jax.nn.one_hot(texts.reshape(B_ * S_), VOCAB_PAD, dtype=jnp.bfloat16)
    out = pl.pallas_call(                      # single invocation: no grid, everything in VMEM
        transformer_kernel,
        out_shape=jax.ShapeDtypeStruct((BATCH, C_PAD), jnp.float32),
        in_specs=[pl.BlockSpec(memory_space=pltpu.MemorySpace.VMEM)] * 3,
        out_specs=pl.BlockSpec(memory_space=pltpu.MemorySpace.VMEM),
        cost_estimate=_cost_estimate(),
    )(onehot, kp["w"], kp["c"])
    return out[:, :NUM_CLASSES]


# ------------------------- deterministic parameter init -------------------------
def init_params(key):
    ks = jax.random.split(key, 16)
    p = {}
    # nn.Embedding + init_weights(): uniform(-0.1, 0.1)
    p["embedding"] = jax.random.uniform(ks[0], (VOCAB_SIZE, EMB_DIM), jnp.float32, -0.1, 0.1)

    # PositionalEncoding buffer
    pos = jnp.arange(MAX_LEN, dtype=jnp.float32)[:, None]
    div = jnp.exp(jnp.arange(0, EMB_DIM, 2, dtype=jnp.float32) * (-math.log(10000.0) / EMB_DIM))
    pe = jnp.zeros((MAX_LEN, EMB_DIM), jnp.float32)
    pe = pe.at[:, 0::2].set(jnp.sin(pos * div))
    pe = pe.at[:, 1::2].set(jnp.cos(pos * div))
    p["pe"] = pe

    def dense(k, shape, scale=0.05):
        return scale * jax.random.normal(k, shape, jnp.float32)

    p["wq"] = dense(ks[1], (NUM_LAYERS, EMB_DIM, HDK))
    p["bq"] = dense(ks[2], (NUM_LAYERS, HDK))
    p["wk"] = dense(ks[3], (NUM_LAYERS, EMB_DIM, HDK))
    p["bk"] = dense(ks[4], (NUM_LAYERS, HDK))
    p["wv"] = dense(ks[5], (NUM_LAYERS, EMB_DIM, HDV))
    p["bv"] = dense(ks[6], (NUM_LAYERS, HDV))
    p["wo"] = dense(ks[7], (NUM_LAYERS, HDV, EMB_DIM))
    p["bo"] = dense(ks[8], (NUM_LAYERS, EMB_DIM))
    p["ln1g"] = jnp.ones((NUM_LAYERS, EMB_DIM), jnp.float32)
    p["ln1b"] = jnp.zeros((NUM_LAYERS, EMB_DIM), jnp.float32)
    p["w1"] = dense(ks[9], (NUM_LAYERS, EMB_DIM, FF_DIM))
    p["b1"] = dense(ks[10], (NUM_LAYERS, FF_DIM))
    p["w2"] = dense(ks[11], (NUM_LAYERS, FF_DIM, EMB_DIM))
    p["b2"] = dense(ks[12], (NUM_LAYERS, EMB_DIM))
    p["ln2g"] = jnp.ones((NUM_LAYERS, EMB_DIM), jnp.float32)
    p["ln2b"] = jnp.zeros((NUM_LAYERS, EMB_DIM), jnp.float32)
    p["wcls"] = dense(ks[13], (EMB_DIM, NUM_CLASSES))
    p["bcls"] = dense(ks[14], (NUM_CLASSES,))
    return p


def prepare_kernel_params(p):
    """Pack all parameters into one bf16 weight slab + one f32 constant slab (done once)."""
    # ---- bf16 matmul-weight slab: every block is (EMB_DIM, 128), lane-dense ----
    w = jnp.zeros((W_ROWS, LANES), jnp.float32)
    w = w.at[W_EMB:W_EMB + EMB_DIM, :VOCAB_SIZE].set((p["embedding"] * SQRT_D).T)
    for l in range(NUM_LAYERS):
        b = W_LAYER + l * W_PER_LAYER
        w = w.at[b + WQ:b + WQ + EMB_DIM, :HDK].set(p["wq"][l] / TEMP)   # 1/sqrt(dk) folded
        w = w.at[b + WK:b + WK + EMB_DIM, :HDK].set(p["wk"][l])
        w = w.at[b + WV:b + WV + EMB_DIM, :HDV].set(p["wv"][l])
        w = w.at[b + WO:b + WO + EMB_DIM, :HDV].set(p["wo"][l].T)
        w = w.at[b + WF1:b + WF1 + EMB_DIM, :FF_DIM].set(p["w1"][l])
        w = w.at[b + WF2:b + WF2 + EMB_DIM, :FF_DIM].set(p["w2"][l].T)
    w = w.at[W_CLS:W_CLS + EMB_DIM, :NUM_CLASSES].set(p["wcls"])

    # ---- f32 constant slab: PE, masks, pool matrix, biases, LN params ----
    c = jnp.zeros((C_ROWS, LANES), jnp.float32)
    c = c.at[C_PE:C_PE + BS, :EMB_DIM].set(jnp.tile(p["pe"], (BATCH, 1)))
    blk = jnp.arange(BS) // MAX_LEN
    amask = jnp.where(blk[:, None] == blk[None, :], 0.0, -1e30).astype(jnp.float32)
    c = c.at[C_AMASK:C_AMASK + BS, :BS].set(amask)
    pool = jnp.where(jnp.arange(BATCH)[:, None] == blk[None, :],
                     1.0 / MAX_LEN, 0.0).astype(jnp.float32)
    c = c.at[C_POOL:C_POOL + BATCH, :BS].set(pool)
    lane_head = jnp.arange(LANES) // D_K
    for h in range(NUM_HEADS):
        c = c.at[C_HMASK + h, :].set((lane_head == h).astype(jnp.float32))
    c = c.at[C_BCLS, :NUM_CLASSES].set(p["bcls"])
    for l in range(NUM_LAYERS):
        b = C_LAYER + l * C_PER_LAYER
        c = c.at[b + CB_BQ, :HDK].set(p["bq"][l] / TEMP)
        c = c.at[b + CB_BK, :HDK].set(p["bk"][l])
        c = c.at[b + CB_BV, :HDV].set(p["bv"][l])
        c = c.at[b + CB_BO, :EMB_DIM].set(p["bo"][l])
        c = c.at[b + CB_LN1G, :EMB_DIM].set(p["ln1g"][l])
        c = c.at[b + CB_LN1B, :EMB_DIM].set(p["ln1b"][l])
        c = c.at[b + CB_B1, :FF_DIM].set(p["b1"][l])
        c = c.at[b + CB_B2, :EMB_DIM].set(p["b2"][l])
        c = c.at[b + CB_LN2G, :EMB_DIM].set(p["ln2g"][l])
        c = c.at[b + CB_LN2B, :EMB_DIM].set(p["ln2b"][l])
    return {"w": w.astype(jnp.bfloat16), "c": c}


# ------------------------------ pure-JAX f32 reference ------------------------------
def reference_forward(texts, p):
    x = p["embedding"][texts] * SQRT_D + p["pe"][None]
    B, S, _ = x.shape
    for l in range(NUM_LAYERS):
        residual = x
        q = x @ p["wq"][l] + p["bq"][l]
        k = x @ p["wk"][l] + p["bk"][l]
        v = x @ p["wv"][l] + p["bv"][l]
        qh = q.reshape(B, S, NUM_HEADS, D_K).transpose(0, 2, 1, 3)
        kh = k.reshape(B, S, NUM_HEADS, D_K).transpose(0, 2, 1, 3)
        vh = v.reshape(B, S, NUM_HEADS, D_V).transpose(0, 2, 1, 3)
        s = jnp.einsum("bhqd,bhkd->bhqk", qh, kh) / TEMP
        a = jax.nn.softmax(s, axis=-1)
        o = jnp.einsum("bhqk,bhkd->bhqd", a, vh).transpose(0, 2, 1, 3).reshape(B, S, -1)
        o = o @ p["wo"][l] + p["bo"][l]
        x = _layer_norm(o + residual, p["ln1g"][l], p["ln1b"][l])
        residual = x
        h1 = jax.nn.relu(x @ p["w1"][l] + p["b1"][l])
        o = h1 @ p["w2"][l] + p["b2"][l]
        x = _layer_norm(o + residual, p["ln2g"][l], p["ln2b"][l])
    pooled = jnp.mean(x, axis=1)
    return pooled @ p["wcls"] + p["bcls"]


if __name__ == "__main__":
    key = jax.random.PRNGKey(0)
    pkey, tkey = jax.random.split(key)
    params = init_params(pkey)
    kparams = prepare_kernel_params(params)

    texts = jax.random.randint(tkey, (BATCH, MAX_LEN), 0, VOCAB_SIZE, dtype=jnp.int32)
    attention_mask = jnp.ones((BATCH, MAX_LEN), jnp.int32)  # unused by the original forward

    out = transformer_classifier(texts, kparams)
    out = jax.block_until_ready(out)
    assert out.shape == (BATCH, NUM_CLASSES)

    ref = reference_forward(texts, params)
    # tolerance covers bf16 MXU operands + the approx (EUP) reciprocal in the softmax
    assert jnp.allclose(out, ref, atol=3e-2, rtol=3e-2), (out, ref)

    print("KERNEL_OK")
</pallas_src>

<mosaic_0001>
module attributes {stable_mosaic.version = 11 : i64} {
  func.func @transformer_kernel(%arg0: memref<16x128xbf16, #tpu.memory_space<vmem>>, %arg1: memref<448x128xbf16, #tpu.memory_space<vmem>>, %arg2: memref<88x128xf32, #tpu.memory_space<vmem>>, %arg3: memref<2x128xf32, #tpu.memory_space<vmem>>) attributes {dimension_semantics = [], scalar_prefetch = 0 : i64, scratch_operands = 0 : i64, tpu.core_type = #tpu.core_type<tc>} {
    %c0 = arith.constant 0 : index
    %c0_0 = arith.constant 0 : index
    %0 = vector.load %arg0[%c0, %c0_0] : memref<16x128xbf16, #tpu.memory_space<vmem>>, vector<16x128xbf16>
    %c0_1 = arith.constant 0 : index
    %c0_2 = arith.constant 0 : index
    %1 = vector.load %arg1[%c0_1, %c0_2] : memref<448x128xbf16, #tpu.memory_space<vmem>>, vector<32x128xbf16>
    %cst = arith.constant dense<0.000000e+00> : vector<16x32xf32>
    %2 = tpu.matmul %0, %1, %cst {dimension_numbers = #tpu.dot_dimension_numbers<[1], [1], [0], [0], [0, 0, 1, 0], [], []>} : vector<16x128xbf16>, vector<32x128xbf16>, vector<16x32xf32> -> vector<16x32xf32>
    %c0_3 = arith.constant 0 : index
    %c0_4 = arith.constant 0 : index
    %3 = vector.load %arg2[%c0_3, %c0_4] : memref<88x128xf32, #tpu.memory_space<vmem>>, vector<16x32xf32>
    %4 = arith.addf %2, %3 : vector<16x32xf32>
    %c16 = arith.constant 16 : index
    %c0_5 = arith.constant 0 : index
    %5 = vector.load %arg2[%c16, %c0_5] : memref<88x128xf32, #tpu.memory_space<vmem>>, vector<16x16xf32>
    %6 = arith.truncf %4 : vector<16x32xf32> to vector<16x32xbf16>
    %c32 = arith.constant 32 : index
    %c0_6 = arith.constant 0 : index
    %7 = vector.load %arg1[%c32, %c0_6] : memref<448x128xbf16, #tpu.memory_space<vmem>>, vector<32x128xbf16>
    %cst_7 = arith.constant dense<0.000000e+00> : vector<16x128xf32>
    %8 = tpu.matmul %6, %7, %cst_7 {dimension_numbers = #tpu.dot_dimension_numbers<[1], [0], [0], [1], [0, 0, 1, 1], [], []>} : vector<16x32xbf16>, vector<32x128xbf16>, vector<16x128xf32> -> vector<16x128xf32>
    %c56 = arith.constant 56 : index
    %c0_8 = arith.constant 0 : index
    %9 = vector.load %arg2[%c56, %c0_8] : memref<88x128xf32, #tpu.memory_space<vmem>>, vector<1x128xf32>
    %10 = vector.broadcast %9 : vector<1x128xf32> to vector<16x128xf32>
    %11 = arith.addf %8, %10 : vector<16x128xf32>
    %c64 = arith.constant 64 : index
    %c0_9 = arith.constant 0 : index
    %12 = vector.load %arg1[%c64, %c0_9] : memref<448x128xbf16, #tpu.memory_space<vmem>>, vector<32x128xbf16>
    %cst_10 = arith.constant dense<0.000000e+00> : vector<16x128xf32>
    %13 = tpu.matmul %6, %12, %cst_10 {dimension_numbers = #tpu.dot_dimension_numbers<[1], [0], [0], [1], [0, 0, 1, 1], [], []>} : vector<16x32xbf16>, vector<32x128xbf16>, vector<16x128xf32> -> vector<16x128xf32>
    %c57 = arith.constant 57 : index
    %c0_11 = arith.constant 0 : index
    %14 = vector.load %arg2[%c57, %c0_11] : memref<88x128xf32, #tpu.memory_space<vmem>>, vector<1x128xf32>
    %15 = vector.broadcast %14 : vector<1x128xf32> to vector<16x128xf32>
    %16 = arith.addf %13, %15 : vector<16x128xf32>
    %c96 = arith.constant 96 : index
    %c0_12 = arith.constant 0 : index
    %17 = vector.load %arg1[%c96, %c0_12] : memref<448x128xbf16, #tpu.memory_space<vmem>>, vector<32x128xbf16>
    %cst_13 = arith.constant dense<0.000000e+00> : vector<16x128xf32>
    %18 = tpu.matmul %6, %17, %cst_13 {dimension_numbers = #tpu.dot_dimension_numbers<[1], [0], [0], [1], [0, 0, 1, 1], [], []>} : vector<16x32xbf16>, vector<32x128xbf16>, vector<16x128xf32> -> vector<16x128xf32>
    %c58 = arith.constant 58 : index
    %c0_14 = arith.constant 0 : index
    %19 = vector.load %arg2[%c58, %c0_14] : memref<88x128xf32, #tpu.memory_space<vmem>>, vector<1x128xf32>
    %20 = vector.broadcast %19 : vector<1x128xf32> to vector<16x128xf32>
    %21 = arith.addf %18, %20 : vector<16x128xf32>
    %22 = arith.truncf %16 : vector<16x128xf32> to vector<16x128xbf16>
    %cst_15 = arith.constant 0.000000e+00 : f32
    %23 = vector.broadcast %cst_15 : f32 to vector<16x128xf32>
    %c40 = arith.constant 40 : index
    %c0_16 = arith.constant 0 : index
    %24 = vector.load %arg2[%c40, %c0_16] : memref<88x128xf32, #tpu.memory_space<vmem>>, vector<1x128xf32>
    %25 = vector.broadcast %24 : vector<1x128xf32> to vector<16x128xf32>
    %26 = arith.mulf %11, %25 : vector<16x128xf32>
    %27 = arith.truncf %26 : vector<16x128xf32> to vector<16x128xbf16>
    %cst_17 = arith.constant dense<0.000000e+00> : vector<16x16xf32>
    %28 = tpu.matmul %27, %22, %cst_17 {dimension_numbers = #tpu.dot_dimension_numbers<[1], [1], [0], [0], [0, 0, 1, 0], [], []>} : vector<16x128xbf16>, vector<16x128xbf16>, vector<16x16xf32> -> vector<16x16xf32>
    %29 = arith.addf %28, %5 : vector<16x16xf32>
    %cst_18 = arith.constant dense<0xFF800000> : vector<16xf32>
    %30 = vector.multi_reduction <maximumf>, %29, %cst_18 [1] : vector<16x16xf32> to vector<16xf32>
    %31 = vector.shape_cast %30 : vector<16xf32> to vector<16x1xf32>
    %32 = vector.broadcast %31 : vector<16x1xf32> to vector<16x16xf32>
    %33 = arith.subf %29, %32 : vector<16x16xf32>
    %34 = math.exp %33 : vector<16x16xf32>
    %cst_19 = arith.constant dense<0.000000e+00> : vector<16xf32>
    %35 = vector.multi_reduction <add>, %34, %cst_19 [1] : vector<16x16xf32> to vector<16xf32>
    %36 = vector.shape_cast %35 : vector<16xf32> to vector<16x1xf32>
    %37 = tpu.reciprocal %36 {approx = true} : vector<16x1xf32> -> vector<16x1xf32>
    %38 = vector.broadcast %37 : vector<16x1xf32> to vector<16x16xf32>
    %39 = arith.mulf %34, %38 : vector<16x16xf32>
    %40 = arith.truncf %39 : vector<16x16xf32> to vector<16x16xbf16>
    %41 = vector.broadcast %24 : vector<1x128xf32> to vector<16x128xf32>
    %42 = arith.mulf %21, %41 : vector<16x128xf32>
    %43 = arith.truncf %42 : vector<16x128xf32> to vector<16x128xbf16>
    %cst_20 = arith.constant dense<0.000000e+00> : vector<16x128xf32>
    %44 = tpu.matmul %40, %43, %cst_20 {dimension_numbers = #tpu.dot_dimension_numbers<[1], [0], [0], [1], [0, 0, 1, 1], [], []>} : vector<16x16xbf16>, vector<16x128xbf16>, vector<16x128xf32> -> vector<16x128xf32>
    %45 = arith.addf %23, %44 : vector<16x128xf32>
    %c41 = arith.constant 41 : index
    %c0_21 = arith.constant 0 : index
    %46 = vector.load %arg2[%c41, %c0_21] : memref<88x128xf32, #tpu.memory_space<vmem>>, vector<1x128xf32>
    %47 = vector.broadcast %46 : vector<1x128xf32> to vector<16x128xf32>
    %48 = arith.mulf %11, %47 : vector<16x128xf32>
    %49 = arith.truncf %48 : vector<16x128xf32> to vector<16x128xbf16>
    %cst_22 = arith.constant dense<0.000000e+00> : vector<16x16xf32>
    %50 = tpu.matmul %49, %22, %cst_22 {dimension_numbers = #tpu.dot_dimension_numbers<[1], [1], [0], [0], [0, 0, 1, 0], [], []>} : vector<16x128xbf16>, vector<16x128xbf16>, vector<16x16xf32> -> vector<16x16xf32>
    %51 = arith.addf %50, %5 : vector<16x16xf32>
    %cst_23 = arith.constant dense<0xFF800000> : vector<16xf32>
    %52 = vector.multi_reduction <maximumf>, %51, %cst_23 [1] : vector<16x16xf32> to vector<16xf32>
    %53 = vector.shape_cast %52 : vector<16xf32> to vector<16x1xf32>
    %54 = vector.broadcast %53 : vector<16x1xf32> to vector<16x16xf32>
    %55 = arith.subf %51, %54 : vector<16x16xf32>
    %56 = math.exp %55 : vector<16x16xf32>
    %cst_24 = arith.constant dense<0.000000e+00> : vector<16xf32>
    %57 = vector.multi_reduction <add>, %56, %cst_24 [1] : vector<16x16xf32> to vector<16xf32>
    %58 = vector.shape_cast %57 : vector<16xf32> to vector<16x1xf32>
    %59 = tpu.reciprocal %58 {approx = true} : vector<16x1xf32> -> vector<16x1xf32>
    %60 = vector.broadcast %59 : vector<16x1xf32> to vector<16x16xf32>
    %61 = arith.mulf %56, %60 : vector<16x16xf32>
    %62 = arith.truncf %61 : vector<16x16xf32> to vector<16x16xbf16>
    %63 = vector.broadcast %46 : vector<1x128xf32> to vector<16x128xf32>
    %64 = arith.mulf %21, %63 : vector<16x128xf32>
    %65 = arith.truncf %64 : vector<16x128xf32> to vector<16x128xbf16>
    %cst_25 = arith.constant dense<0.000000e+00> : vector<16x128xf32>
    %66 = tpu.matmul %62, %65, %cst_25 {dimension_numbers = #tpu.dot_dimension_numbers<[1], [0], [0], [1], [0, 0, 1, 1], [], []>} : vector<16x16xbf16>, vector<16x128xbf16>, vector<16x128xf32> -> vector<16x128xf32>
    %67 = arith.addf %45, %66 : vector<16x128xf32>
    %c42 = arith.constant 42 : index
    %c0_26 = arith.constant 0 : index
    %68 = vector.load %arg2[%c42, %c0_26] : memref<88x128xf32, #tpu.memory_space<vmem>>, vector<1x128xf32>
    %69 = vector.broadcast %68 : vector<1x128xf32> to vector<16x128xf32>
    %70 = arith.mulf %11, %69 : vector<16x128xf32>
    %71 = arith.truncf %70 : vector<16x128xf32> to vector<16x128xbf16>
    %cst_27 = arith.constant dense<0.000000e+00> : vector<16x16xf32>
    %72 = tpu.matmul %71, %22, %cst_27 {dimension_numbers = #tpu.dot_dimension_numbers<[1], [1], [0], [0], [0, 0, 1, 0], [], []>} : vector<16x128xbf16>, vector<16x128xbf16>, vector<16x16xf32> -> vector<16x16xf32>
    %73 = arith.addf %72, %5 : vector<16x16xf32>
    %cst_28 = arith.constant dense<0xFF800000> : vector<16xf32>
    %74 = vector.multi_reduction <maximumf>, %73, %cst_28 [1] : vector<16x16xf32> to vector<16xf32>
    %75 = vector.shape_cast %74 : vector<16xf32> to vector<16x1xf32>
    %76 = vector.broadcast %75 : vector<16x1xf32> to vector<16x16xf32>
    %77 = arith.subf %73, %76 : vector<16x16xf32>
    %78 = math.exp %77 : vector<16x16xf32>
    %cst_29 = arith.constant dense<0.000000e+00> : vector<16xf32>
    %79 = vector.multi_reduction <add>, %78, %cst_29 [1] : vector<16x16xf32> to vector<16xf32>
    %80 = vector.shape_cast %79 : vector<16xf32> to vector<16x1xf32>
    %81 = tpu.reciprocal %80 {approx = true} : vector<16x1xf32> -> vector<16x1xf32>
    %82 = vector.broadcast %81 : vector<16x1xf32> to vector<16x16xf32>
    %83 = arith.mulf %78, %82 : vector<16x16xf32>
    %84 = arith.truncf %83 : vector<16x16xf32> to vector<16x16xbf16>
    %85 = vector.broadcast %68 : vector<1x128xf32> to vector<16x128xf32>
    %86 = arith.mulf %21, %85 : vector<16x128xf32>
    %87 = arith.truncf %86 : vector<16x128xf32> to vector<16x128xbf16>
    %cst_30 = arith.constant dense<0.000000e+00> : vector<16x128xf32>
    %88 = tpu.matmul %84, %87, %cst_30 {dimension_numbers = #tpu.dot_dimension_numbers<[1], [0], [0], [1], [0, 0, 1, 1], [], []>} : vector<16x16xbf16>, vector<16x128xbf16>, vector<16x128xf32> -> vector<16x128xf32>
    %89 = arith.addf %67, %88 : vector<16x128xf32>
    %c43 = arith.constant 43 : index
    %c0_31 = arith.constant 0 : index
    %90 = vector.load %arg2[%c43, %c0_31] : memref<88x128xf32, #tpu.memory_space<vmem>>, vector<1x128xf32>
    %91 = vector.broadcast %90 : vector<1x128xf32> to vector<16x128xf32>
    %92 = arith.mulf %11, %91 : vector<16x128xf32>
    %93 = arith.truncf %92 : vector<16x128xf32> to vector<16x128xbf16>
    %cst_32 = arith.constant dense<0.000000e+00> : vector<16x16xf32>
    %94 = tpu.matmul %93, %22, %cst_32 {dimension_numbers = #tpu.dot_dimension_numbers<[1], [1], [0], [0], [0, 0, 1, 0], [], []>} : vector<16x128xbf16>, vector<16x128xbf16>, vector<16x16xf32> -> vector<16x16xf32>
    %95 = arith.addf %94, %5 : vector<16x16xf32>
    %cst_33 = arith.constant dense<0xFF800000> : vector<16xf32>
    %96 = vector.multi_reduction <maximumf>, %95, %cst_33 [1] : vector<16x16xf32> to vector<16xf32>
    %97 = vector.shape_cast %96 : vector<16xf32> to vector<16x1xf32>
    %98 = vector.broadcast %97 : vector<16x1xf32> to vector<16x16xf32>
    %99 = arith.subf %95, %98 : vector<16x16xf32>
    %100 = math.exp %99 : vector<16x16xf32>
    %cst_34 = arith.constant dense<0.000000e+00> : vector<16xf32>
    %101 = vector.multi_reduction <add>, %100, %cst_34 [1] : vector<16x16xf32> to vector<16xf32>
    %102 = vector.shape_cast %101 : vector<16xf32> to vector<16x1xf32>
    %103 = tpu.reciprocal %102 {approx = true} : vector<16x1xf32> -> vector<16x1xf32>
    %104 = vector.broadcast %103 : vector<16x1xf32> to vector<16x16xf32>
    %105 = arith.mulf %100, %104 : vector<16x16xf32>
    %106 = arith.truncf %105 : vector<16x16xf32> to vector<16x16xbf16>
    %107 = vector.broadcast %90 : vector<1x128xf32> to vector<16x128xf32>
    %108 = arith.mulf %21, %107 : vector<16x128xf32>
    %109 = arith.truncf %108 : vector<16x128xf32> to vector<16x128xbf16>
    %cst_35 = arith.constant dense<0.000000e+00> : vector<16x128xf32>
    %110 = tpu.matmul %106, %109, %cst_35 {dimension_numbers = #tpu.dot_dimension_numbers<[1], [0], [0], [1], [0, 0, 1, 1], [], []>} : vector<16x16xbf16>, vector<16x128xbf16>, vector<16x128xf32> -> vector<16x128xf32>
    %111 = arith.addf %89, %110 : vector<16x128xf32>
    %112 = arith.truncf %111 : vector<16x128xf32> to vector<16x128xbf16>
    %c128 = arith.constant 128 : index
    %c0_36 = arith.constant 0 : index
    %113 = vector.load %arg1[%c128, %c0_36] : memref<448x128xbf16, #tpu.memory_space<vmem>>, vector<32x128xbf16>
    %cst_37 = arith.constant dense<0.000000e+00> : vector<16x32xf32>
    %114 = tpu.matmul %112, %113, %cst_37 {dimension_numbers = #tpu.dot_dimension_numbers<[1], [1], [0], [0], [0, 0, 1, 0], [], []>} : vector<16x128xbf16>, vector<32x128xbf16>, vector<16x32xf32> -> vector<16x32xf32>
    %c59 = arith.constant 59 : index
    %c0_38 = arith.constant 0 : index
    %115 = vector.load %arg2[%c59, %c0_38] : memref<88x128xf32, #tpu.memory_space<vmem>>, vector<1x32xf32>
    %116 = vector.broadcast %115 : vector<1x32xf32> to vector<16x32xf32>
    %117 = arith.addf %114, %116 : vector<16x32xf32>
    %118 = arith.addf %117, %4 : vector<16x32xf32>
    %c60 = arith.constant 60 : index
    %c0_39 = arith.constant 0 : index
    %119 = vector.load %arg2[%c60, %c0_39] : memref<88x128xf32, #tpu.memory_space<vmem>>, vector<1x32xf32>
    %c61 = arith.constant 61 : index
    %c0_40 = arith.constant 0 : index
    %120 = vector.load %arg2[%c61, %c0_40] : memref<88x128xf32, #tpu.memory_space<vmem>>, vector<1x32xf32>
    %cst_41 = arith.constant dense<0.000000e+00> : vector<16xf32>
    %121 = vector.multi_reduction <add>, %118, %cst_41 [1] : vector<16x32xf32> to vector<16xf32>
    %122 = vector.shape_cast %121 : vector<16xf32> to vector<16x1xf32>
    %cst_42 = arith.constant 3.200000e+01 : f32
    %123 = vector.broadcast %cst_42 : f32 to vector<16x1xf32>
    %124 = arith.divf %122, %123 : vector<16x1xf32>
    %125 = vector.broadcast %124 : vector<16x1xf32> to vector<16x32xf32>
    %126 = arith.subf %118, %125 : vector<16x32xf32>
    %127 = arith.mulf %126, %126 : vector<16x32xf32>
    %cst_43 = arith.constant dense<0.000000e+00> : vector<16xf32>
    %128 = vector.multi_reduction <add>, %127, %cst_43 [1] : vector<16x32xf32> to vector<16xf32>
    %129 = vector.shape_cast %128 : vector<16xf32> to vector<16x1xf32>
    %cst_44 = arith.constant 3.200000e+01 : f32
    %130 = vector.broadcast %cst_44 : f32 to vector<16x1xf32>
    %131 = arith.divf %129, %130 : vector<16x1xf32>
    %132 = vector.broadcast %124 : vector<16x1xf32> to vector<16x32xf32>
    %133 = arith.subf %118, %132 : vector<16x32xf32>
    %cst_45 = arith.constant 9.99999997E-7 : f32
    %134 = vector.broadcast %cst_45 : f32 to vector<16x1xf32>
    %135 = arith.addf %131, %134 : vector<16x1xf32>
    %136 = math.rsqrt %135 : vector<16x1xf32>
    %137 = vector.broadcast %136 : vector<16x1xf32> to vector<16x32xf32>
    %138 = arith.mulf %133, %137 : vector<16x32xf32>
    %139 = vector.broadcast %119 : vector<1x32xf32> to vector<16x32xf32>
    %140 = arith.mulf %138, %139 : vector<16x32xf32>
    %141 = vector.broadcast %120 : vector<1x32xf32> to vector<16x32xf32>
    %142 = arith.addf %140, %141 : vector<16x32xf32>
    %143 = arith.truncf %142 : vector<16x32xf32> to vector<16x32xbf16>
    %c160 = arith.constant 160 : index
    %c0_46 = arith.constant 0 : index
    %144 = vector.load %arg1[%c160, %c0_46] : memref<448x128xbf16, #tpu.memory_space<vmem>>, vector<32x128xbf16>
    %cst_47 = arith.constant dense<0.000000e+00> : vector<16x128xf32>
    %145 = tpu.matmul %143, %144, %cst_47 {dimension_numbers = #tpu.dot_dimension_numbers<[1], [0], [0], [1], [0, 0, 1, 1], [], []>} : vector<16x32xbf16>, vector<32x128xbf16>, vector<16x128xf32> -> vector<16x128xf32>
    %c62 = arith.constant 62 : index
    %c0_48 = arith.constant 0 : index
    %146 = vector.load %arg2[%c62, %c0_48] : memref<88x128xf32, #tpu.memory_space<vmem>>, vector<1x128xf32>
    %147 = vector.broadcast %146 : vector<1x128xf32> to vector<16x128xf32>
    %148 = arith.addf %145, %147 : vector<16x128xf32>
    %cst_49 = arith.constant 0.000000e+00 : f32
    %149 = vector.broadcast %cst_49 : f32 to vector<16x128xf32>
    %150 = arith.maximumf %148, %149 : vector<16x128xf32>
    %151 = arith.truncf %150 : vector<16x128xf32> to vector<16x128xbf16>
    %c192 = arith.constant 192 : index
    %c0_50 = arith.constant 0 : index
    %152 = vector.load %arg1[%c192, %c0_50] : memref<448x128xbf16, #tpu.memory_space<vmem>>, vector<32x128xbf16>
    %cst_51 = arith.constant dense<0.000000e+00> : vector<16x32xf32>
    %153 = tpu.matmul %151, %152, %cst_51 {dimension_numbers = #tpu.dot_dimension_numbers<[1], [1], [0], [0], [0, 0, 1, 0], [], []>} : vector<16x128xbf16>, vector<32x128xbf16>, vector<16x32xf32> -> vector<16x32xf32>
    %c63 = arith.constant 63 : index
    %c0_52 = arith.constant 0 : index
    %154 = vector.load %arg2[%c63, %c0_52] : memref<88x128xf32, #tpu.memory_space<vmem>>, vector<1x32xf32>
    %155 = vector.broadcast %154 : vector<1x32xf32> to vector<16x32xf32>
    %156 = arith.addf %153, %155 : vector<16x32xf32>
    %157 = arith.addf %156, %142 : vector<16x32xf32>
    %c64_53 = arith.constant 64 : index
    %c0_54 = arith.constant 0 : index
    %158 = vector.load %arg2[%c64_53, %c0_54] : memref<88x128xf32, #tpu.memory_space<vmem>>, vector<1x32xf32>
    %c65 = arith.constant 65 : index
    %c0_55 = arith.constant 0 : index
    %159 = vector.load %arg2[%c65, %c0_55] : memref<88x128xf32, #tpu.memory_space<vmem>>, vector<1x32xf32>
    %cst_56 = arith.constant dense<0.000000e+00> : vector<16xf32>
    %160 = vector.multi_reduction <add>, %157, %cst_56 [1] : vector<16x32xf32> to vector<16xf32>
    %161 = vector.shape_cast %160 : vector<16xf32> to vector<16x1xf32>
    %cst_57 = arith.constant 3.200000e+01 : f32
    %162 = vector.broadcast %cst_57 : f32 to vector<16x1xf32>
    %163 = arith.divf %161, %162 : vector<16x1xf32>
    %164 = vector.broadcast %163 : vector<16x1xf32> to vector<16x32xf32>
    %165 = arith.subf %157, %164 : vector<16x32xf32>
    %166 = arith.mulf %165, %165 : vector<16x32xf32>
    %cst_58 = arith.constant dense<0.000000e+00> : vector<16xf32>
    %167 = vector.multi_reduction <add>, %166, %cst_58 [1] : vector<16x32xf32> to vector<16xf32>
    %168 = vector.shape_cast %167 : vector<16xf32> to vector<16x1xf32>
    %cst_59 = arith.constant 3.200000e+01 : f32
    %169 = vector.broadcast %cst_59 : f32 to vector<16x1xf32>
    %170 = arith.divf %168, %169 : vector<16x1xf32>
    %171 = vector.broadcast %163 : vector<16x1xf32> to vector<16x32xf32>
    %172 = arith.subf %157, %171 : vector<16x32xf32>
    %cst_60 = arith.constant 9.99999997E-7 : f32
    %173 = vector.broadcast %cst_60 : f32 to vector<16x1xf32>
    %174 = arith.addf %170, %173 : vector<16x1xf32>
    %175 = math.rsqrt %174 : vector<16x1xf32>
    %176 = vector.broadcast %175 : vector<16x1xf32> to vector<16x32xf32>
    %177 = arith.mulf %172, %176 : vector<16x32xf32>
    %178 = vector.broadcast %158 : vector<1x32xf32> to vector<16x32xf32>
    %179 = arith.mulf %177, %178 : vector<16x32xf32>
    %180 = vector.broadcast %159 : vector<1x32xf32> to vector<16x32xf32>
    %181 = arith.addf %179, %180 : vector<16x32xf32>
    %182 = arith.truncf %181 : vector<16x32xf32> to vector<16x32xbf16>
    %c224 = arith.constant 224 : index
    %c0_61 = arith.constant 0 : index
    %183 = vector.load %arg1[%c224, %c0_61] : memref<448x128xbf16, #tpu.memory_space<vmem>>, vector<32x128xbf16>
    %cst_62 = arith.constant dense<0.000000e+00> : vector<16x128xf32>
    %184 = tpu.matmul %182, %183, %cst_62 {dimension_numbers = #tpu.dot_dimension_numbers<[1], [0], [0], [1], [0, 0, 1, 1], [], []>} : vector<16x32xbf16>, vector<32x128xbf16>, vector<16x128xf32> -> vector<16x128xf32>
    %c72 = arith.constant 72 : index
    %c0_63 = arith.constant 0 : index
    %185 = vector.load %arg2[%c72, %c0_63] : memref<88x128xf32, #tpu.memory_space<vmem>>, vector<1x128xf32>
    %186 = vector.broadcast %185 : vector<1x128xf32> to vector<16x128xf32>
    %187 = arith.addf %184, %186 : vector<16x128xf32>
    %c256 = arith.constant 256 : index
    %c0_64 = arith.constant 0 : index
    %188 = vector.load %arg1[%c256, %c0_64] : memref<448x128xbf16, #tpu.memory_space<vmem>>, vector<32x128xbf16>
    %cst_65 = arith.constant dense<0.000000e+00> : vector<16x128xf32>
    %189 = tpu.matmul %182, %188, %cst_65 {dimension_numbers = #tpu.dot_dimension_numbers<[1], [0], [0], [1], [0, 0, 1, 1], [], []>} : vector<16x32xbf16>, vector<32x128xbf16>, vector<16x128xf32> -> vector<16x128xf32>
    %c73 = arith.constant 73 : index
    %c0_66 = arith.constant 0 : index
    %190 = vector.load %arg2[%c73, %c0_66] : memref<88x128xf32, #tpu.memory_space<vmem>>, vector<1x128xf32>
    %191 = vector.broadcast %190 : vector<1x128xf32> to vector<16x128xf32>
    %192 = arith.addf %189, %191 : vector<16x128xf32>
    %c288 = arith.constant 288 : index
    %c0_67 = arith.constant 0 : index
    %193 = vector.load %arg1[%c288, %c0_67] : memref<448x128xbf16, #tpu.memory_space<vmem>>, vector<32x128xbf16>
    %cst_68 = arith.constant dense<0.000000e+00> : vector<16x128xf32>
    %194 = tpu.matmul %182, %193, %cst_68 {dimension_numbers = #tpu.dot_dimension_numbers<[1], [0], [0], [1], [0, 0, 1, 1], [], []>} : vector<16x32xbf16>, vector<32x128xbf16>, vector<16x128xf32> -> vector<16x128xf32>
    %c74 = arith.constant 74 : index
    %c0_69 = arith.constant 0 : index
    %195 = vector.load %arg2[%c74, %c0_69] : memref<88x128xf32, #tpu.memory_space<vmem>>, vector<1x128xf32>
    %196 = vector.broadcast %195 : vector<1x128xf32> to vector<16x128xf32>
    %197 = arith.addf %194, %196 : vector<16x128xf32>
    %198 = arith.truncf %192 : vector<16x128xf32> to vector<16x128xbf16>
    %cst_70 = arith.constant 0.000000e+00 : f32
    %199 = vector.broadcast %cst_70 : f32 to vector<16x128xf32>
    %c40_71 = arith.constant 40 : index
    %c0_72 = arith.constant 0 : index
    %200 = vector.load %arg2[%c40_71, %c0_72] : memref<88x128xf32, #tpu.memory_space<vmem>>, vector<1x128xf32>
    %201 = vector.broadcast %200 : vector<1x128xf32> to vector<16x128xf32>
    %202 = arith.mulf %187, %201 : vector<16x128xf32>
    %203 = arith.truncf %202 : vector<16x128xf32> to vector<16x128xbf16>
    %cst_73 = arith.constant dense<0.000000e+00> : vector<16x16xf32>
    %204 = tpu.matmul %203, %198, %cst_73 {dimension_numbers = #tpu.dot_dimension_numbers<[1], [1], [0], [0], [0, 0, 1, 0], [], []>} : vector<16x128xbf16>, vector<16x128xbf16>, vector<16x16xf32> -> vector<16x16xf32>
    %205 = arith.addf %204, %5 : vector<16x16xf32>
    %cst_74 = arith.constant dense<0xFF800000> : vector<16xf32>
    %206 = vector.multi_reduction <maximumf>, %205, %cst_74 [1] : vector<16x16xf32> to vector<16xf32>
    %207 = vector.shape_cast %206 : vector<16xf32> to vector<16x1xf32>
    %208 = vector.broadcast %207 : vector<16x1xf32> to vector<16x16xf32>
    %209 = arith.subf %205, %208 : vector<16x16xf32>
    %210 = math.exp %209 : vector<16x16xf32>
    %cst_75 = arith.constant dense<0.000000e+00> : vector<16xf32>
    %211 = vector.multi_reduction <add>, %210, %cst_75 [1] : vector<16x16xf32> to vector<16xf32>
    %212 = vector.shape_cast %211 : vector<16xf32> to vector<16x1xf32>
    %213 = tpu.reciprocal %212 {approx = true} : vector<16x1xf32> -> vector<16x1xf32>
    %214 = vector.broadcast %213 : vector<16x1xf32> to vector<16x16xf32>
    %215 = arith.mulf %210, %214 : vector<16x16xf32>
    %216 = arith.truncf %215 : vector<16x16xf32> to vector<16x16xbf16>
    %217 = vector.broadcast %200 : vector<1x128xf32> to vector<16x128xf32>
    %218 = arith.mulf %197, %217 : vector<16x128xf32>
    %219 = arith.truncf %218 : vector<16x128xf32> to vector<16x128xbf16>
    %cst_76 = arith.constant dense<0.000000e+00> : vector<16x128xf32>
    %220 = tpu.matmul %216, %219, %cst_76 {dimension_numbers = #tpu.dot_dimension_numbers<[1], [0], [0], [1], [0, 0, 1, 1], [], []>} : vector<16x16xbf16>, vector<16x128xbf16>, vector<16x128xf32> -> vector<16x128xf32>
    %221 = arith.addf %199, %220 : vector<16x128xf32>
    %c41_77 = arith.constant 41 : index
    %c0_78 = arith.constant 0 : index
    %222 = vector.load %arg2[%c41_77, %c0_78] : memref<88x128xf32, #tpu.memory_space<vmem>>, vector<1x128xf32>
    %223 = vector.broadcast %222 : vector<1x128xf32> to vector<16x128xf32>
    %224 = arith.mulf %187, %223 : vector<16x128xf32>
    %225 = arith.truncf %224 : vector<16x128xf32> to vector<16x128xbf16>
    %cst_79 = arith.constant dense<0.000000e+00> : vector<16x16xf32>
    %226 = tpu.matmul %225, %198, %cst_79 {dimension_numbers = #tpu.dot_dimension_numbers<[1], [1], [0], [0], [0, 0, 1, 0], [], []>} : vector<16x128xbf16>, vector<16x128xbf16>, vector<16x16xf32> -> vector<16x16xf32>
    %227 = arith.addf %226, %5 : vector<16x16xf32>
    %cst_80 = arith.constant dense<0xFF800000> : vector<16xf32>
    %228 = vector.multi_reduction <maximumf>, %227, %cst_80 [1] : vector<16x16xf32> to vector<16xf32>
    %229 = vector.shape_cast %228 : vector<16xf32> to vector<16x1xf32>
    %230 = vector.broadcast %229 : vector<16x1xf32> to vector<16x16xf32>
    %231 = arith.subf %227, %230 : vector<16x16xf32>
    %232 = math.exp %231 : vector<16x16xf32>
    %cst_81 = arith.constant dense<0.000000e+00> : vector<16xf32>
    %233 = vector.multi_reduction <add>, %232, %cst_81 [1] : vector<16x16xf32> to vector<16xf32>
    %234 = vector.shape_cast %233 : vector<16xf32> to vector<16x1xf32>
    %235 = tpu.reciprocal %234 {approx = true} : vector<16x1xf32> -> vector<16x1xf32>
    %236 = vector.broadcast %235 : vector<16x1xf32> to vector<16x16xf32>
    %237 = arith.mulf %232, %236 : vector<16x16xf32>
    %238 = arith.truncf %237 : vector<16x16xf32> to vector<16x16xbf16>
    %239 = vector.broadcast %222 : vector<1x128xf32> to vector<16x128xf32>
    %240 = arith.mulf %197, %239 : vector<16x128xf32>
    %241 = arith.truncf %240 : vector<16x128xf32> to vector<16x128xbf16>
    %cst_82 = arith.constant dense<0.000000e+00> : vector<16x128xf32>
    %242 = tpu.matmul %238, %241, %cst_82 {dimension_numbers = #tpu.dot_dimension_numbers<[1], [0], [0], [1], [0, 0, 1, 1], [], []>} : vector<16x16xbf16>, vector<16x128xbf16>, vector<16x128xf32> -> vector<16x128xf32>
    %243 = arith.addf %221, %242 : vector<16x128xf32>
    %c42_83 = arith.constant 42 : index
    %c0_84 = arith.constant 0 : index
    %244 = vector.load %arg2[%c42_83, %c0_84] : memref<88x128xf32, #tpu.memory_space<vmem>>, vector<1x128xf32>
    %245 = vector.broadcast %244 : vector<1x128xf32> to vector<16x128xf32>
    %246 = arith.mulf %187, %245 : vector<16x128xf32>
    %247 = arith.truncf %246 : vector<16x128xf32> to vector<16x128xbf16>
    %cst_85 = arith.constant dense<0.000000e+00> : vector<16x16xf32>
    %248 = tpu.matmul %247, %198, %cst_85 {dimension_numbers = #tpu.dot_dimension_numbers<[1], [1], [0], [0], [0, 0, 1, 0], [], []>} : vector<16x128xbf16>, vector<16x128xbf16>, vector<16x16xf32> -> vector<16x16xf32>
    %249 = arith.addf %248, %5 : vector<16x16xf32>
    %cst_86 = arith.constant dense<0xFF800000> : vector<16xf32>
    %250 = vector.multi_reduction <maximumf>, %249, %cst_86 [1] : vector<16x16xf32> to vector<16xf32>
    %251 = vector.shape_cast %250 : vector<16xf32> to vector<16x1xf32>
    %252 = vector.broadcast %251 : vector<16x1xf32> to vector<16x16xf32>
    %253 = arith.subf %249, %252 : vector<16x16xf32>
    %254 = math.exp %253 : vector<16x16xf32>
    %cst_87 = arith.constant dense<0.000000e+00> : vector<16xf32>
    %255 = vector.multi_reduction <add>, %254, %cst_87 [1] : vector<16x16xf32> to vector<16xf32>
    %256 = vector.shape_cast %255 : vector<16xf32> to vector<16x1xf32>
    %257 = tpu.reciprocal %256 {approx = true} : vector<16x1xf32> -> vector<16x1xf32>
    %258 = vector.broadcast %257 : vector<16x1xf32> to vector<16x16xf32>
    %259 = arith.mulf %254, %258 : vector<16x16xf32>
    %260 = arith.truncf %259 : vector<16x16xf32> to vector<16x16xbf16>
    %261 = vector.broadcast %244 : vector<1x128xf32> to vector<16x128xf32>
    %262 = arith.mulf %197, %261 : vector<16x128xf32>
    %263 = arith.truncf %262 : vector<16x128xf32> to vector<16x128xbf16>
    %cst_88 = arith.constant dense<0.000000e+00> : vector<16x128xf32>
    %264 = tpu.matmul %260, %263, %cst_88 {dimension_numbers = #tpu.dot_dimension_numbers<[1], [0], [0], [1], [0, 0, 1, 1], [], []>} : vector<16x16xbf16>, vector<16x128xbf16>, vector<16x128xf32> -> vector<16x128xf32>
    %265 = arith.addf %243, %264 : vector<16x128xf32>
    %c43_89 = arith.constant 43 : index
    %c0_90 = arith.constant 0 : index
    %266 = vector.load %arg2[%c43_89, %c0_90] : memref<88x128xf32, #tpu.memory_space<vmem>>, vector<1x128xf32>
    %267 = vector.broadcast %266 : vector<1x128xf32> to vector<16x128xf32>
    %268 = arith.mulf %187, %267 : vector<16x128xf32>
    %269 = arith.truncf %268 : vector<16x128xf32> to vector<16x128xbf16>
    %cst_91 = arith.constant dense<0.000000e+00> : vector<16x16xf32>
    %270 = tpu.matmul %269, %198, %cst_91 {dimension_numbers = #tpu.dot_dimension_numbers<[1], [1], [0], [0], [0, 0, 1, 0], [], []>} : vector<16x128xbf16>, vector<16x128xbf16>, vector<16x16xf32> -> vector<16x16xf32>
    %271 = arith.addf %270, %5 : vector<16x16xf32>
    %cst_92 = arith.constant dense<0xFF800000> : vector<16xf32>
    %272 = vector.multi_reduction <maximumf>, %271, %cst_92 [1] : vector<16x16xf32> to vector<16xf32>
    %273 = vector.shape_cast %272 : vector<16xf32> to vector<16x1xf32>
    %274 = vector.broadcast %273 : vector<16x1xf32> to vector<16x16xf32>
    %275 = arith.subf %271, %274 : vector<16x16xf32>
    %276 = math.exp %275 : vector<16x16xf32>
    %cst_93 = arith.constant dense<0.000000e+00> : vector<16xf32>
    %277 = vector.multi_reduction <add>, %276, %cst_93 [1] : vector<16x16xf32> to vector<16xf32>
    %278 = vector.shape_cast %277 : vector<16xf32> to vector<16x1xf32>
    %279 = tpu.reciprocal %278 {approx = true} : vector<16x1xf32> -> vector<16x1xf32>
    %280 = vector.broadcast %279 : vector<16x1xf32> to vector<16x16xf32>
    %281 = arith.mulf %276, %280 : vector<16x16xf32>
    %282 = arith.truncf %281 : vector<16x16xf32> to vector<16x16xbf16>
    %283 = vector.broadcast %266 : vector<1x128xf32> to vector<16x128xf32>
    %284 = arith.mulf %197, %283 : vector<16x128xf32>
    %285 = arith.truncf %284 : vector<16x128xf32> to vector<16x128xbf16>
    %cst_94 = arith.constant dense<0.000000e+00> : vector<16x128xf32>
    %286 = tpu.matmul %282, %285, %cst_94 {dimension_numbers = #tpu.dot_dimension_numbers<[1], [0], [0], [1], [0, 0, 1, 1], [], []>} : vector<16x16xbf16>, vector<16x128xbf16>, vector<16x128xf32> -> vector<16x128xf32>
    %287 = arith.addf %265, %286 : vector<16x128xf32>
    %288 = arith.truncf %287 : vector<16x128xf32> to vector<16x128xbf16>
    %c320 = arith.constant 320 : index
    %c0_95 = arith.constant 0 : index
    %289 = vector.load %arg1[%c320, %c0_95] : memref<448x128xbf16, #tpu.memory_space<vmem>>, vector<32x128xbf16>
    %cst_96 = arith.constant dense<0.000000e+00> : vector<16x32xf32>
    %290 = tpu.matmul %288, %289, %cst_96 {dimension_numbers = #tpu.dot_dimension_numbers<[1], [1], [0], [0], [0, 0, 1, 0], [], []>} : vector<16x128xbf16>, vector<32x128xbf16>, vector<16x32xf32> -> vector<16x32xf32>
    %c75 = arith.constant 75 : index
    %c0_97 = arith.constant 0 : index
    %291 = vector.load %arg2[%c75, %c0_97] : memref<88x128xf32, #tpu.memory_space<vmem>>, vector<1x32xf32>
    %292 = vector.broadcast %291 : vector<1x32xf32> to vector<16x32xf32>
    %293 = arith.addf %290, %292 : vector<16x32xf32>
    %294 = arith.addf %293, %181 : vector<16x32xf32>
    %c76 = arith.constant 76 : index
    %c0_98 = arith.constant 0 : index
    %295 = vector.load %arg2[%c76, %c0_98] : memref<88x128xf32, #tpu.memory_space<vmem>>, vector<1x32xf32>
    %c77 = arith.constant 77 : index
    %c0_99 = arith.constant 0 : index
    %296 = vector.load %arg2[%c77, %c0_99] : memref<88x128xf32, #tpu.memory_space<vmem>>, vector<1x32xf32>
    %cst_100 = arith.constant dense<0.000000e+00> : vector<16xf32>
    %297 = vector.multi_reduction <add>, %294, %cst_100 [1] : vector<16x32xf32> to vector<16xf32>
    %298 = vector.shape_cast %297 : vector<16xf32> to vector<16x1xf32>
    %cst_101 = arith.constant 3.200000e+01 : f32
    %299 = vector.broadcast %cst_101 : f32 to vector<16x1xf32>
    %300 = arith.divf %298, %299 : vector<16x1xf32>
    %301 = vector.broadcast %300 : vector<16x1xf32> to vector<16x32xf32>
    %302 = arith.subf %294, %301 : vector<16x32xf32>
    %303 = arith.mulf %302, %302 : vector<16x32xf32>
    %cst_102 = arith.constant dense<0.000000e+00> : vector<16xf32>
    %304 = vector.multi_reduction <add>, %303, %cst_102 [1] : vector<16x32xf32> to vector<16xf32>
    %305 = vector.shape_cast %304 : vector<16xf32> to vector<16x1xf32>
    %cst_103 = arith.constant 3.200000e+01 : f32
    %306 = vector.broadcast %cst_103 : f32 to vector<16x1xf32>
    %307 = arith.divf %305, %306 : vector<16x1xf32>
    %308 = vector.broadcast %300 : vector<16x1xf32> to vector<16x32xf32>
    %309 = arith.subf %294, %308 : vector<16x32xf32>
    %cst_104 = arith.constant 9.99999997E-7 : f32
    %310 = vector.broadcast %cst_104 : f32 to vector<16x1xf32>
    %311 = arith.addf %307, %310 : vector<16x1xf32>
    %312 = math.rsqrt %311 : vector<16x1xf32>
    %313 = vector.broadcast %312 : vector<16x1xf32> to vector<16x32xf32>
    %314 = arith.mulf %309, %313 : vector<16x32xf32>
    %315 = vector.broadcast %295 : vector<1x32xf32> to vector<16x32xf32>
    %316 = arith.mulf %314, %315 : vector<16x32xf32>
    %317 = vector.broadcast %296 : vector<1x32xf32> to vector<16x32xf32>
    %318 = arith.addf %316, %317 : vector<16x32xf32>
    %319 = arith.truncf %318 : vector<16x32xf32> to vector<16x32xbf16>
    %c352 = arith.constant 352 : index
    %c0_105 = arith.constant 0 : index
    %320 = vector.load %arg1[%c352, %c0_105] : memref<448x128xbf16, #tpu.memory_space<vmem>>, vector<32x128xbf16>
    %cst_106 = arith.constant dense<0.000000e+00> : vector<16x128xf32>
    %321 = tpu.matmul %319, %320, %cst_106 {dimension_numbers = #tpu.dot_dimension_numbers<[1], [0], [0], [1], [0, 0, 1, 1], [], []>} : vector<16x32xbf16>, vector<32x128xbf16>, vector<16x128xf32> -> vector<16x128xf32>
    %c78 = arith.constant 78 : index
    %c0_107 = arith.constant 0 : index
    %322 = vector.load %arg2[%c78, %c0_107] : memref<88x128xf32, #tpu.memory_space<vmem>>, vector<1x128xf32>
    %323 = vector.broadcast %322 : vector<1x128xf32> to vector<16x128xf32>
    %324 = arith.addf %321, %323 : vector<16x128xf32>
    %cst_108 = arith.constant 0.000000e+00 : f32
    %325 = vector.broadcast %cst_108 : f32 to vector<16x128xf32>
    %326 = arith.maximumf %324, %325 : vector<16x128xf32>
    %327 = arith.truncf %326 : vector<16x128xf32> to vector<16x128xbf16>
    %c384 = arith.constant 384 : index
    %c0_109 = arith.constant 0 : index
    %328 = vector.load %arg1[%c384, %c0_109] : memref<448x128xbf16, #tpu.memory_space<vmem>>, vector<32x128xbf16>
    %cst_110 = arith.constant dense<0.000000e+00> : vector<16x32xf32>
    %329 = tpu.matmul %327, %328, %cst_110 {dimension_numbers = #tpu.dot_dimension_numbers<[1], [1], [0], [0], [0, 0, 1, 0], [], []>} : vector<16x128xbf16>, vector<32x128xbf16>, vector<16x32xf32> -> vector<16x32xf32>
    %c79 = arith.constant 79 : index
    %c0_111 = arith.constant 0 : index
    %330 = vector.load %arg2[%c79, %c0_111] : memref<88x128xf32, #tpu.memory_space<vmem>>, vector<1x32xf32>
    %331 = vector.broadcast %330 : vector<1x32xf32> to vector<16x32xf32>
    %332 = arith.addf %329, %331 : vector<16x32xf32>
    %333 = arith.addf %332, %318 : vector<16x32xf32>
    %c80 = arith.constant 80 : index
    %c0_112 = arith.constant 0 : index
    %334 = vector.load %arg2[%c80, %c0_112] : memref<88x128xf32, #tpu.memory_space<vmem>>, vector<1x32xf32>
    %c81 = arith.constant 81 : index
    %c0_113 = arith.constant 0 : index
    %335 = vector.load %arg2[%c81, %c0_113] : memref<88x128xf32, #tpu.memory_space<vmem>>, vector<1x32xf32>
    %cst_114 = arith.constant dense<0.000000e+00> : vector<16xf32>
    %336 = vector.multi_reduction <add>, %333, %cst_114 [1] : vector<16x32xf32> to vector<16xf32>
    %337 = vector.shape_cast %336 : vector<16xf32> to vector<16x1xf32>
    %cst_115 = arith.constant 3.200000e+01 : f32
    %338 = vector.broadcast %cst_115 : f32 to vector<16x1xf32>
    %339 = arith.divf %337, %338 : vector<16x1xf32>
    %340 = vector.broadcast %339 : vector<16x1xf32> to vector<16x32xf32>
    %341 = arith.subf %333, %340 : vector<16x32xf32>
    %342 = arith.mulf %341, %341 : vector<16x32xf32>
    %cst_116 = arith.constant dense<0.000000e+00> : vector<16xf32>
    %343 = vector.multi_reduction <add>, %342, %cst_116 [1] : vector<16x32xf32> to vector<16xf32>
    %344 = vector.shape_cast %343 : vector<16xf32> to vector<16x1xf32>
    %cst_117 = arith.constant 3.200000e+01 : f32
    %345 = vector.broadcast %cst_117 : f32 to vector<16x1xf32>
    %346 = arith.divf %344, %345 : vector<16x1xf32>
    %347 = vector.broadcast %339 : vector<16x1xf32> to vector<16x32xf32>
    %348 = arith.subf %333, %347 : vector<16x32xf32>
    %cst_118 = arith.constant 9.99999997E-7 : f32
    %349 = vector.broadcast %cst_118 : f32 to vector<16x1xf32>
    %350 = arith.addf %346, %349 : vector<16x1xf32>
    %351 = math.rsqrt %350 : vector<16x1xf32>
    %352 = vector.broadcast %351 : vector<16x1xf32> to vector<16x32xf32>
    %353 = arith.mulf %348, %352 : vector<16x32xf32>
    %354 = vector.broadcast %334 : vector<1x32xf32> to vector<16x32xf32>
    %355 = arith.mulf %353, %354 : vector<16x32xf32>
    %356 = vector.broadcast %335 : vector<1x32xf32> to vector<16x32xf32>
    %357 = arith.addf %355, %356 : vector<16x32xf32>
    %c32_119 = arith.constant 32 : index
    %c0_120 = arith.constant 0 : index
    %358 = vector.load %arg2[%c32_119, %c0_120] : memref<88x128xf32, #tpu.memory_space<vmem>>, vector<2x16xf32>
    %359 = arith.truncf %358 : vector<2x16xf32> to vector<2x16xbf16>
    %360 = arith.truncf %357 : vector<16x32xf32> to vector<16x32xbf16>
    %cst_121 = arith.constant dense<0.000000e+00> : vector<2x32xf32>
    %361 = tpu.matmul %359, %360, %cst_121 {dimension_numbers = #tpu.dot_dimension_numbers<[1], [0], [0], [1], [0, 0, 1, 1], [], []>} : vector<2x16xbf16>, vector<16x32xbf16>, vector<2x32xf32> -> vector<2x32xf32>
    %362 = arith.truncf %361 : vector<2x32xf32> to vector<2x32xbf16>
    %c416 = arith.constant 416 : index
    %c0_122 = arith.constant 0 : index
    %363 = vector.load %arg1[%c416, %c0_122] : memref<448x128xbf16, #tpu.memory_space<vmem>>, vector<32x128xbf16>
    %cst_123 = arith.constant dense<0.000000e+00> : vector<2x128xf32>
    %364 = tpu.matmul %362, %363, %cst_123 {dimension_numbers = #tpu.dot_dimension_numbers<[1], [0], [0], [1], [0, 0, 1, 1], [], []>} : vector<2x32xbf16>, vector<32x128xbf16>, vector<2x128xf32> -> vector<2x128xf32>
    %c48 = arith.constant 48 : index
    %c0_124 = arith.constant 0 : index
    %365 = vector.load %arg2[%c48, %c0_124] : memref<88x128xf32, #tpu.memory_space<vmem>>, vector<1x128xf32>
    %366 = vector.broadcast %365 : vector<1x128xf32> to vector<2x128xf32>
    %367 = arith.addf %364, %366 : vector<2x128xf32>
    %c0_125 = arith.constant 0 : index
    %c0_126 = arith.constant 0 : index
    %368 = vector.load %arg3[%c0_125, %c0_126] : memref<2x128xf32, #tpu.memory_space<vmem>>, vector<2x128xf32>
    tpu.vector_store %arg3[%c0_125, %c0_126], %367 {strides = array<i32>} : memref<2x128xf32, #tpu.memory_space<vmem>>, vector<2x128xf32>,
    return
  }
}

</mosaic_0001>

<llo_original>
// kernel: eq.1
$region0: #{eq.1}
  %s0 = inlined_call_operand.hbm [shape: s32[2,8], index: 0, kind: input, shape index: {}]
  %s1 = inlined_call_operand.vmem [shape: s32[16], index: 1, kind: output, shape index: {}]
  $region1: #{eq.1} parent=0
    #allocation0 [shape = 'u8[1024]{0}', space=vmem, size = 0x400, scoped, tag = 'operand span for operand 0']
    #allocation1 [shape = 's32[1]{0}', space=sflag, size = 0x4, scoped, tag = 'scoped memory for eq.1']
    #allocation2 [shape = 'u8[4096]{0}', space=vmem, size = 0x1000, scoped, tag = 'scoped mem for output reshape']
    #allocation3 [shape = 'u8[4096]{0}', space=vmem, size = 0x1000, scoped, tag = 'scoped mem for input reshape']
    %2 = vsyncpa [#allocation1], 0
    %s4 = ssub.s32 32, 32
    %5 = vsyncadd [#allocation1], %s4
    %s7 = sshll.u32 [#allocation0], 4
    %s8 = int_to_ptr.vmem [resolvable:$true] %s7
    %10 = dma.hbm_to_vmem [thread:$0]  %s0, 32, %s8, [#allocation1]
    %11 = dma.done [#allocation1], 32
    %s13 = sshllo.u32 0, 2
    %v14 = vld [vmem:[#allocation0] sm:%s13]
    %15 = vst [vmem:[#allocation3] sm:%s13] %v14
    %v16 = vld [vmem:[#allocation3] sm:$0x1]
    %vm17 = vcmask 64512
    %18 = vst.msk [vmem:[#allocation2] sm:$0x1] %vm17, %v16
    %s19 = scalar_lea.vmem [#allocation3], 1
    %v20 = vld [vmem:[%s19] sm:$0x1]
    %21 = vrot.lane.b32.xlu0 %v20, 8
    %v22 = vpop.permute.xlu0 %21
    %vm23 = vcmask 130112
    %24 = vst.msk [vmem:[#allocation2] sm:$0x1] %vm23, %v22
    %s26 = sshllo.u32 0, 1
    %v28 = vld [vmem:[#allocation2] sm:%s26]
    %s29 = sshllo.u32 0, 1
    %30 = vst [vmem:[%s1] sm:%s29] %v28
    %31 = vsyncpa [#allocation1], 1

// kernel: transformer_classifier.1
$region0: #{transformer_classifier.1}
  #allocation0 [shape = 'u32[]', space=smem, size = 0x4, offset = 0x4, fixed_abs, tag = 'smem constant byte address 0x4 - core index']
  #allocation1 [shape = 'u32[144,128]{1,0:T(1,128)}', space=vmem, size = 0x12000, scoped, tag = 'internal scratch']
  %s0 = inlined_call_operand.vmem [shape: bf16[16,128], index: 0, kind: input, shape index: {}]
  %s1 = inlined_call_operand.hbm [shape: bf16[448,128], index: 1, kind: input, shape index: {}]
  %s2 = inlined_call_operand.hbm [shape: f32[88,128], index: 2, kind: input, shape index: {}]
  %s3 = inlined_call_operand.hbm [shape: f32[2,128], index: 3, kind: output, shape index: {}]
  %s4 = sld [smem:[#allocation0]]
  $region30: #{transformer_classifier.1} parent=0
    _
  %s6 = ssub.s32 1, %s4
  %s7 = scalar_select 0, %s6, %s4
  $region1: #{transformer_classifier.1} parent=0
    #allocation2 [shape = 'u8[114688]{0}', space=vmem, size = 0x1c000, scoped, tag = 'input window, operand 1, single buffered']
    #allocation3 [shape = 's32[1]{0}', space=sflag, size = 0x4, scoped, tag = 'scoped memory for transformer_classifier.1']
    #allocation4 [shape = 's32[1]{0}', space=sflag, size = 0x4, scoped, tag = 'scoped memory for transformer_classifier.1']
    #allocation5 [shape = 'u8[45056]{0}', space=vmem, size = 0xb000, scoped, tag = 'input window, operand 2, single buffered']
    #allocation6 [shape = 's32[1]{0}', space=sflag, size = 0x4, scoped, tag = 'scoped memory for transformer_classifier.1']
    #allocation7 [shape = 'u8[1024]{0}', space=vmem, size = 0x400, scoped, tag = 'output window, operand 0, single buffered']
    %8 = vsyncpa [#allocation3], 0
    %9 = vsyncpa [#allocation6], 0
    %10 = vsyncpa [#allocation4], 0
    // Predicated region
    $region2: #{transformer_classifier.1} parent=1 // pred_check
      _
    $region3: #{transformer_classifier.1} parent=1 // pred_check_branch
      %12 = sbr.rel (0) target = $region5
    $region4: #{transformer_classifier.1} parent=1 // pred_region
      _
    $region5: #{transformer_classifier.1} parent=1 // pred_fallthru
      _
    // Predicated region
    $region6: #{transformer_classifier.1} parent=1 // pred_check
      _
    $region7: #{transformer_classifier.1} parent=1 // pred_check_branch
      %14 = sbr.rel (0) target = $region9
    $region8: #{transformer_classifier.1} parent=1 // pred_region
      %s16 = ssub.s32 3584, 3584
      %17 = vsyncadd [#allocation3], %s16
      %s18 = sshll.u32 [#allocation2], 4
      %s19 = int_to_ptr.vmem [resolvable:$true] %s18
      %24 = dma.hbm_to_vmem [thread:$0]  %s1, 3584, %s19, [#allocation3], 64, 64, 4
    $region9: #{transformer_classifier.1} parent=1 // pred_fallthru
      _
    // Predicated region
    $region10: #{transformer_classifier.1} parent=1 // pred_check
      _
    $region11: #{transformer_classifier.1} parent=1 // pred_check_branch
      %26 = sbr.rel (0) target = $region13
    $region12: #{transformer_classifier.1} parent=1 // pred_region
      %s28 = ssub.s32 1408, 1408
      %29 = vsyncadd [#allocation6], %s28
      %s30 = sshll.u32 [#allocation5], 4
      %s31 = int_to_ptr.vmem [resolvable:$true] %s30
      %36 = dma.hbm_to_vmem [thread:$0]  %s2, 1408, %s31, [#allocation6], 128, 128, 8
    $region13: #{transformer_classifier.1} parent=1 // pred_fallthru
      _
    // Predicated region
    $region14: #{transformer_classifier.1} parent=1 // pred_check
      _
    $region15: #{transformer_classifier.1} parent=1 // pred_check_branch
      %38 = sbr.rel (0) target = $region17
    $region16: #{transformer_classifier.1} parent=1 // pred_region
      %39 = dma.done [#allocation3], 3584
    $region17: #{transformer_classifier.1} parent=1 // pred_fallthru
      _
    // Predicated region
    $region18: #{transformer_classifier.1} parent=1 // pred_check
      _
    $region19: #{transformer_classifier.1} parent=1 // pred_check_branch
      %41 = sbr.rel (0) target = $region21
    $region20: #{transformer_classifier.1} parent=1 // pred_region
      %42 = dma.done [#allocation6], 1408
    $region21: #{transformer_classifier.1} parent=1 // pred_fallthru
      _
    %v44 = vld [vmem:[%s0] sm:$0xf]
    %v45 = vld [vmem:[%s0 + $0x4] sm:$0xf]
    %v46 = vld [vmem:[#allocation2] sm:$0xf]
    %v47 = vld [vmem:[#allocation2 + $0x4] sm:$0xf]
    %v48 = vld [vmem:[#allocation2 + $0x8] sm:$0xf]
    %v49 = vld [vmem:[#allocation2 + $0xc] sm:$0xf]
    %v50 = vld [vmem:[#allocation5] sm:$0xff]
    %v51 = vld [vmem:[#allocation5 + $0x8] sm:$0xff]
    %v54 = vunpack.c.l.b16 %v44
    %v55 = vunpack.c.l.b16 %v45
    %v56 = vpack.c.b16 %v55, %v54
    %v62 = vunpack.c.l.b16 %v46
    %v63 = vunpack.c.l.b16 %v47
    %v64 = vunpack.c.l.b16 %v48
    %v65 = vunpack.c.l.b16 %v49
    %v66 = vpack.c.b16 %v63, %v62
    %v67 = vpack.c.b16 %v65, %v64
    %70 = vmatprep.subr.bf16.mxu0 0
    %71 = vmatpush1.bf16.xpose.msra.mxu0 %v66
    %72 = vmatprep.subr.bf16.mxu0 0
    %73 = vmatpush1.bf16.xpose.msra.mxu0 %v67
    %74 = vmatprep.subr.bf16.mxu0 0
    %75 = vmatpush1.bf16.xpose.msra.mxu0 0
    %76 = vmatprep.subr.bf16.mxu0 0
    %77 = vmatpush1.bf16.xpose.msra.mxu0 0
    %78 = vmatprep.subr.bf16.mxu0 0
    %79 = vmatpush1.bf16.xpose.msra.mxu0 0
    %80 = vmatprep.subr.bf16.mxu0 0
    %81 = vmatpush1.bf16.xpose.msra.mxu0 0
    %82 = vmatprep.subr.bf16.mxu0 0
    %83 = vmatpush1.bf16.xpose.msra.mxu0 0
    %84 = vmatprep.subr.bf16.mxu0 0
    %85 = vmatpush1.bf16.xpose.msra.mxu0 0
    %86 = vmatprep.subr.bf16.mxu0 0
    %87 = vmatpush1.bf16.xpose.msra.mxu0 0
    %88 = vmatprep.subr.bf16.mxu0 0
    %89 = vmatpush1.bf16.xpose.msra.mxu0 0
    %90 = vmatprep.subr.bf16.mxu0 0
    %91 = vmatpush1.bf16.xpose.msra.mxu0 0
    %92 = vmatprep.subr.bf16.mxu0 0
    %93 = vmatpush1.bf16.xpose.msra.mxu0 0
    %94 = vmatprep.subr.bf16.mxu0 0
    %95 = vmatpush1.bf16.xpose.msra.mxu0 0
    %96 = vmatprep.subr.bf16.mxu0 0
    %97 = vmatpush1.bf16.xpose.msra.mxu0 0
    %98 = vmatprep.subr.bf16.mxu0 0
    %99 = vmatpush1.bf16.xpose.msra.mxu0 0
    %100 = vmatprep.subr.bf16.mxu0 0
    %101 = vmatpush1.bf16.xpose.msra.mxu0 0
    %102 = vmatprep.mubr.bf16.mxu0 0
    %103 = vmatmul.mubr.bf16.gmra.mrb[0].mxu0 %v56
    %v104 = vpop.f32.mrb[0].mxu0
    %v105 = vadd.f32 %v50, %v104
    %v106 = vpop.f32.mrb[0].mxu0
    %v107 = vpop.f32.mrb[0].mxu0
    %v108 = vadd.f32 %v51, %v107
    %v109 = vpop.f32.mrb[0].mxu0
    %110 = vdwg.mxu0
    %v111 = vld [vmem:[#allocation5 + $0x10] sm:$0xff]
    %v112 = vld [vmem:[#allocation5 + $0x18] sm:$0xff]
    %v113 = vpack.c.bf16 %v108, %v105
    %v114 = vld [vmem:[#allocation2 + $0x10] sm:$0xf]
    %v115 = vld [vmem:[#allocation2 + $0x14] sm:$0xf]
    %v116 = vld [vmem:[#allocation2 + $0x18] sm:$0xf]
    %v117 = vld [vmem:[#allocation2 + $0x1c] sm:$0xf]
    %v118 = vld [vmem:[#allocation5 + $0x38] sm:$0x1]
    %v119 = vlaneseq
    %v120 = vshrl.u32 %v119, 7
    %v121 = vsub.s32 0, %v120
    %v122 = vrot.slane %v118, %v121
    %v127 = vunpack.c.l.b16 %v114
    %v128 = vunpack.c.l.b16 %v115
    %v129 = vunpack.c.l.b16 %v116
    %v130 = vunpack.c.l.b16 %v117
    %v131 = vpack.c.b16 %v128, %v127
    %v132 = vpack.c.b16 %v130, %v129
    %vm135 = vcmask 261120
    %v137 = vsel %vm135, %v113, 0
    %139 = vmatprep.subr.bf16.mxu0 0
    %140 = vmatpush1.bf16.msra.mxu0 %v131
    %141 = vmatprep.subr.bf16.mxu0 0
    %142 = vmatpush1.bf16.msra.mxu0 %v132
    %143 = vmatprep.subr.bf16.mxu0 0
    %144 = vmatpush1.bf16.msra.mxu0 0
    %145 = vmatprep.subr.bf16.mxu0 0
    %146 = vmatpush1.bf16.msra.mxu0 0
    %147 = vmatprep.subr.bf16.mxu0 0
    %148 = vmatpush1.bf16.msra.mxu0 0
    %149 = vmatprep.subr.bf16.mxu0 0
    %150 = vmatpush1.bf16.msra.mxu0 0
    %151 = vmatprep.subr.bf16.mxu0 0
    %152 = vmatpush1.bf16.msra.mxu0 0
    %153 = vmatprep.subr.bf16.mxu0 0
    %154 = vmatpush1.bf16.msra.mxu0 0
    %155 = vmatprep.subr.bf16.mxu0 0
    %156 = vmatpush1.bf16.msra.mxu0 0
    %157 = vmatprep.subr.bf16.mxu0 0
    %158 = vmatpush1.bf16.msra.mxu0 0
    %159 = vmatprep.subr.bf16.mxu0 0
    %160 = vmatpush1.bf16.msra.mxu0 0
    %161 = vmatprep.subr.bf16.mxu0 0
    %162 = vmatpush1.bf16.msra.mxu0 0
    %163 = vmatprep.subr.bf16.mxu0 0
    %164 = vmatpush1.bf16.msra.mxu0 0
    %165 = vmatprep.subr.bf16.mxu0 0
    %166 = vmatpush1.bf16.msra.mxu0 0
    %167 = vmatprep.subr.bf16.mxu0 0
    %168 = vmatpush1.bf16.msra.mxu0 0
    %169 = vmatprep.subr.bf16.mxu0 0
    %170 = vmatpush1.bf16.msra.mxu0 0
    %171 = vmatprep.mubr.bf16.mxu0 0
    %172 = vmatmul.mubr.bf16.gmra.mrb[0].mxu0 %v137
    %v173 = vpop.f32.mrb[0].mxu0
    %v174 = vadd.f32 %v122, %v173
    %v175 = vpop.f32.mrb[0].mxu0
    %v176 = vpop.f32.mrb[0].mxu0
    %v177 = vadd.f32 %v122, %v176
    %v178 = vpop.f32.mrb[0].mxu0
    %179 = vdwg.mxu0
    %v180 = vld [vmem:[#allocation2 + $0x20] sm:$0xf]
    %v181 = vld [vmem:[#allocation2 + $0x24] sm:$0xf]
    %v182 = vld [vmem:[#allocation2 + $0x28] sm:$0xf]
    %v183 = vld [vmem:[#allocation2 + $0x2c] sm:$0xf]
    %v184 = vld [vmem:[#allocation5 + $0x39] sm:$0x1]
    %v185 = vlaneseq
    %v186 = vshrl.u32 %v185, 7
    %v187 = vsub.s32 0, %v186
    %v188 = vrot.slane %v184, %v187
    %v193 = vunpack.c.l.b16 %v180
    %v194 = vunpack.c.l.b16 %v181
    %v195 = vunpack.c.l.b16 %v182
    %v196 = vunpack.c.l.b16 %v183
    %v197 = vpack.c.b16 %v194, %v193
    %v198 = vpack.c.b16 %v196, %v195
    %201 = vmatprep.subr.bf16.mxu0 0
    %202 = vmatpush1.bf16.msra.mxu0 %v197
    %203 = vmatprep.subr.bf16.mxu0 0
    %204 = vmatpush1.bf16.msra.mxu0 %v198
    %205 = vmatprep.subr.bf16.mxu0 0
    %206 = vmatpush1.bf16.msra.mxu0 0
    %207 = vmatprep.subr.bf16.mxu0 0
    %208 = vmatpush1.bf16.msra.mxu0 0
    %209 = vmatprep.subr.bf16.mxu0 0
    %210 = vmatpush1.bf16.msra.mxu0 0
    %211 = vmatprep.subr.bf16.mxu0 0
    %212 = vmatpush1.bf16.msra.mxu0 0
    %213 = vmatprep.subr.bf16.mxu0 0
    %214 = vmatpush1.bf16.msra.mxu0 0
    %215 = vmatprep.subr.bf16.mxu0 0
    %216 = vmatpush1.bf16.msra.mxu0 0
    %217 = vmatprep.subr.bf16.mxu0 0
    %218 = vmatpush1.bf16.msra.mxu0 0
    %219 = vmatprep.subr.bf16.mxu0 0
    %220 = vmatpush1.bf16.msra.mxu0 0
    %221 = vmatprep.subr.bf16.mxu0 0
    %222 = vmatpush1.bf16.msra.mxu0 0
    %223 = vmatprep.subr.bf16.mxu0 0
    %224 = vmatpush1.bf16.msra.mxu0 0
    %225 = vmatprep.subr.bf16.mxu0 0
    %226 = vmatpush1.bf16.msra.mxu0 0
    %227 = vmatprep.subr.bf16.mxu0 0
    %228 = vmatpush1.bf16.msra.mxu0 0
    %229 = vmatprep.subr.bf16.mxu0 0
    %230 = vmatpush1.bf16.msra.mxu0 0
    %231 = vmatprep.subr.bf16.mxu0 0
    %232 = vmatpush1.bf16.msra.mxu0 0
    %233 = vmatprep.mubr.bf16.mxu0 0
    %234 = vmatmul.mubr.bf16.gmra.mrb[0].mxu0 %v137
    %v235 = vpop.f32.mrb[0].mxu0
    %v236 = vadd.f32 %v188, %v235
    %v237 = vpop.f32.mrb[0].mxu0
    %v238 = vpop.f32.mrb[0].mxu0
    %v239 = vadd.f32 %v188, %v238
    %v240 = vpop.f32.mrb[0].mxu0
    %241 = vdwg.mxu0
    %v242 = vld [vmem:[#allocation2 + $0x30] sm:$0xf]
    %v243 = vld [vmem:[#allocation2 + $0x34] sm:$0xf]
    %v244 = vld [vmem:[#allocation2 + $0x38] sm:$0xf]
    %v245 = vld [vmem:[#allocation2 + $0x3c] sm:$0xf]
    %v246 = vld [vmem:[#allocation5 + $0x3a] sm:$0x1]
    %v247 = vlaneseq
    %v248 = vshrl.u32 %v247, 7
    %v249 = vsub.s32 0, %v248
    %v250 = vrot.slane %v246, %v249
    %v255 = vunpack.c.l.b16 %v242
    %v256 = vunpack.c.l.b16 %v243
    %v257 = vunpack.c.l.b16 %v244
    %v258 = vunpack.c.l.b16 %v245
    %v259 = vpack.c.b16 %v256, %v255
    %v260 = vpack.c.b16 %v258, %v257
    %263 = vmatprep.subr.bf16.mxu0 0
    %264 = vmatpush1.bf16.msra.mxu0 %v259
    %265 = vmatprep.subr.bf16.mxu0 0
    %266 = vmatpush1.bf16.msra.mxu0 %v260
    %267 = vmatprep.subr.bf16.mxu0 0
    %268 = vmatpush1.bf16.msra.mxu0 0
    %269 = vmatprep.subr.bf16.mxu0 0
    %270 = vmatpush1.bf16.msra.mxu0 0
    %271 = vmatprep.subr.bf16.mxu0 0
    %272 = vmatpush1.bf16.msra.mxu0 0
    %273 = vmatprep.subr.bf16.mxu0 0
    %274 = vmatpush1.bf16.msra.mxu0 0
    %275 = vmatprep.subr.bf16.mxu0 0
    %276 = vmatpush1.bf16.msra.mxu0 0
    %277 = vmatprep.subr.bf16.mxu0 0
    %278 = vmatpush1.bf16.msra.mxu0 0
    %279 = vmatprep.subr.bf16.mxu0 0
    %280 = vmatpush1.bf16.msra.mxu0 0
    %281 = vmatprep.subr.bf16.mxu0 0
    %282 = vmatpush1.bf16.msra.mxu0 0
    %283 = vmatprep.subr.bf16.mxu0 0
    %284 = vmatpush1.bf16.msra.mxu0 0
    %285 = vmatprep.subr.bf16.mxu0 0
    %286 = vmatpush1.bf16.msra.mxu0 0
    %287 = vmatprep.subr.bf16.mxu0 0
    %288 = vmatpush1.bf16.msra.mxu0 0
    %289 = vmatprep.subr.bf16.mxu0 0
    %290 = vmatpush1.bf16.msra.mxu0 0
    %291 = vmatprep.subr.bf16.mxu0 0
    %292 = vmatpush1.bf16.msra.mxu0 0
    %293 = vmatprep.subr.bf16.mxu0 0
    %294 = vmatpush1.bf16.msra.mxu0 0
    %295 = vmatprep.mubr.bf16.mxu0 0
    %296 = vmatmul.mubr.bf16.gmra.mrb[0].mxu0 %v137
    %v297 = vpop.f32.mrb[0].mxu0
    %v298 = vadd.f32 %v250, %v297
    %v299 = vpop.f32.mrb[0].mxu0
    %v300 = vpop.f32.mrb[0].mxu0
    %v301 = vadd.f32 %v250, %v300
    %v302 = vpop.f32.mrb[0].mxu0
    %303 = vdwg.mxu0
    %v304 = vpack.c.bf16 %v239, %v236
    %v305 = vld [vmem:[#allocation5 + $0x28] sm:$0x1]
    %v306 = vlaneseq
    %v307 = vshrl.u32 %v306, 7
    %v308 = vsub.s32 0, %v307
    %v309 = vrot.slane %v305, %v308
    %v310 = vmul.f32 %v174, %v309
    %v311 = vmul.f32 %v177, %v309
    %v312 = vpack.c.bf16 %v311, %v310
    %313 = vmatprep.subr.bf16.mxu0 0
    %314 = vmatpush1.bf16.xpose.msra.mxu0 %v304
    %315 = vmatprep.subr.bf16.mxu0 0
    %316 = vmatpush1.bf16.xpose.msra.mxu0 0
    %317 = vmatprep.subr.bf16.mxu0 0
    %318 = vmatpush1.bf16.xpose.msra.mxu0 0
    %319 = vmatprep.subr.bf16.mxu0 0
    %320 = vmatpush1.bf16.xpose.msra.mxu0 0
    %321 = vmatprep.subr.bf16.mxu0 0
    %322 = vmatpush1.bf16.xpose.msra.mxu0 0
    %323 = vmatprep.subr.bf16.mxu0 0
    %324 = vmatpush1.bf16.xpose.msra.mxu0 0
    %325 = vmatprep.subr.bf16.mxu0 0
    %326 = vmatpush1.bf16.xpose.msra.mxu0 0
    %327 = vmatprep.subr.bf16.mxu0 0
    %328 = vmatpush1.bf16.xpose.msra.mxu0 0
    %329 = vmatprep.subr.bf16.mxu0 0
    %330 = vmatpush1.bf16.xpose.msra.mxu0 0
    %331 = vmatprep.subr.bf16.mxu0 0
    %332 = vmatpush1.bf16.xpose.msra.mxu0 0
    %333 = vmatprep.subr.bf16.mxu0 0
    %334 = vmatpush1.bf16.xpose.msra.mxu0 0
    %335 = vmatprep.subr.bf16.mxu0 0
    %336 = vmatpush1.bf16.xpose.msra.mxu0 0
    %337 = vmatprep.subr.bf16.mxu0 0
    %338 = vmatpush1.bf16.xpose.msra.mxu0 0
    %339 = vmatprep.subr.bf16.mxu0 0
    %340 = vmatpush1.bf16.xpose.msra.mxu0 0
    %341 = vmatprep.subr.bf16.mxu0 0
    %342 = vmatpush1.bf16.xpose.msra.mxu0 0
    %343 = vmatprep.subr.bf16.mxu0 0
    %344 = vmatpush1.bf16.xpose.msra.mxu0 0
    %345 = vmatprep.mubr.bf16.mxu0 0
    %346 = vmatmul.mubr.bf16.gmra.mrb[0].mxu0 %v312
    %v347 = vpop.f32.mrb[0].mxu0
    %v348 = vadd.f32 %v111, %v347
    %v349 = vpop.f32.mrb[0].mxu0
    %v350 = vpop.f32.mrb[0].mxu0
    %v351 = vadd.f32 %v112, %v350
    %v352 = vpop.f32.mrb[0].mxu0
    %353 = vdwg.mxu0
    %vm354 = vcmask 130048
    %v355 = vsel %vm354, %v348, -inf
    %356 = vmax.xlane.f32.xlu0 %v355
    %v357 = vpop.xlane.xlu0 %356
    %v358 = vsel %vm354, %v351, -inf
    %359 = vmax.xlane.f32.xlu0 %v358
    %v360 = vpop.xlane.xlu0 %359
    %v361 = vsub.f32 %v348, %v357
    %v362 = vsub.f32 %v351, %v360
    %v363 = vmul.f32 %v361, 1.442695
    %v364 = vpow.pop %v363
    %v365 = vmul.f32 %v362, 1.442695
    %v366 = vpow.pop %v365
    %v367 = vsel %vm354, %v364, 0.0
    %368 = vadd.xlane.f32.xlu0 %v367
    %v369 = vpop.xlane.xlu0 %368
    %v370 = vsel %vm354, %v366, 0.0
    %371 = vadd.xlane.f32.xlu0 %v370
    %v372 = vpop.xlane.xlu0 %371
    %v373 = vrcp.pop %v369
    %v374 = vrcp.pop %v372
    %v375 = vmul.f32 %v364, %v373
    %v376 = vmul.f32 %v366, %v374
    %v377 = vpack.c.bf16 %v376, %v375
    %v378 = vmul.f32 %v298, %v309
    %v379 = vmul.f32 %v301, %v309
    %v380 = vpack.c.bf16 %v379, %v378
    %v381 = vld [vmem:[#allocation5 + $0x29] sm:$0x1]
    %v382 = vlaneseq
    %v383 = vshrl.u32 %v382, 7
    %v384 = vsub.s32 0, %v383
    %v385 = vrot.slane %v381, %v384
    %v386 = vmul.f32 %v174, %v385
    %v387 = vmul.f32 %v177, %v385
    %v388 = vpack.c.bf16 %v387, %v386
    %389 = vmatprep.subr.bf16.mxu0 0
    %390 = vmatpush1.bf16.xpose.msra.mxu0 %v304
    %391 = vmatprep.subr.bf16.mxu0 0
    %392 = vmatpush1.bf16.xpose.msra.mxu0 0
    %393 = vmatprep.subr.bf16.mxu0 0
    %394 = vmatpush1.bf16.xpose.msra.mxu0 0
    %395 = vmatprep.subr.bf16.mxu0 0
    %396 = vmatpush1.bf16.xpose.msra.mxu0 0
    %397 = vmatprep.subr.bf16.mxu0 0
    %398 = vmatpush1.bf16.xpose.msra.mxu0 0
    %399 = vmatprep.subr.bf16.mxu0 0
    %400 = vmatpush1.bf16.xpose.msra.mxu0 0
    %401 = vmatprep.subr.bf16.mxu0 0
    %402 = vmatpush1.bf16.xpose.msra.mxu0 0
    %403 = vmatprep.subr.bf16.mxu0 0
    %404 = vmatpush1.bf16.xpose.msra.mxu0 0
    %405 = vmatprep.subr.bf16.mxu0 0
    %406 = vmatpush1.bf16.xpose.msra.mxu0 0
    %407 = vmatprep.subr.bf16.mxu0 0
    %408 = vmatpush1.bf16.xpose.msra.mxu0 0
    %409 = vmatprep.subr.bf16.mxu0 0
    %410 = vmatpush1.bf16.xpose.msra.mxu0 0
    %411 = vmatprep.subr.bf16.mxu0 0
    %412 = vmatpush1.bf16.xpose.msra.mxu0 0
    %413 = vmatprep.subr.bf16.mxu0 0
    %414 = vmatpush1.bf16.xpose.msra.mxu0 0
    %415 = vmatprep.subr.bf16.mxu0 0
    %416 = vmatpush1.bf16.xpose.msra.mxu0 0
    %417 = vmatprep.subr.bf16.mxu0 0
    %418 = vmatpush1.bf16.xpose.msra.mxu0 0
    %419 = vmatprep.subr.bf16.mxu0 0
    %420 = vmatpush1.bf16.xpose.msra.mxu0 0
    %421 = vmatprep.mubr.bf16.mxu0 0
    %422 = vmatmul.mubr.bf16.gmra.mrb[0].mxu0 %v388
    %v423 = vpop.f32.mrb[0].mxu0
    %v424 = vadd.f32 %v111, %v423
    %v425 = vpop.f32.mrb[0].mxu0
    %v426 = vpop.f32.mrb[0].mxu0
    %v427 = vadd.f32 %v112, %v426
    %v428 = vpop.f32.mrb[0].mxu0
    %429 = vdwg.mxu0
    %v430 = vsel %vm354, %v424, -inf
    %431 = vmax.xlane.f32.xlu0 %v430
    %v432 = vpop.xlane.xlu0 %431
    %v433 = vsel %vm354, %v427, -inf
    %434 = vmax.xlane.f32.xlu0 %v433
    %v435 = vpop.xlane.xlu0 %434
    %v436 = vsub.f32 %v424, %v432
    %v437 = vsub.f32 %v427, %v435
    %v438 = vmul.f32 %v436, 1.442695
    %v439 = vpow.pop %v438
    %v440 = vmul.f32 %v437, 1.442695
    %v441 = vpow.pop %v440
    %v442 = vsel %vm354, %v439, 0.0
    %443 = vadd.xlane.f32.xlu0 %v442
    %v444 = vpop.xlane.xlu0 %443
    %v445 = vsel %vm354, %v441, 0.0
    %446 = vadd.xlane.f32.xlu0 %v445
    %v447 = vpop.xlane.xlu0 %446
    %v448 = vrcp.pop %v444
    %v449 = vrcp.pop %v447
    %v450 = vmul.f32 %v439, %v448
    %v451 = vmul.f32 %v441, %v449
    %v452 = vpack.c.bf16 %v451, %v450
    %v453 = vmul.f32 %v298, %v385
    %v454 = vmul.f32 %v301, %v385
    %v455 = vpack.c.bf16 %v454, %v453
    %v457 = vsel %vm354, %v452, 0
    %459 = vmatprep.subr.bf16.mxu0 0
    %460 = vmatpush1.bf16.msra.mxu0 %v455
    %461 = vmatprep.subr.bf16.mxu0 0
    %462 = vmatpush1.bf16.msra.mxu0 0
    %463 = vmatprep.subr.bf16.mxu0 0
    %464 = vmatpush1.bf16.msra.mxu0 0
    %465 = vmatprep.subr.bf16.mxu0 0
    %466 = vmatpush1.bf16.msra.mxu0 0
    %467 = vmatprep.subr.bf16.mxu0 0
    %468 = vmatpush1.bf16.msra.mxu0 0
    %469 = vmatprep.subr.bf16.mxu0 0
    %470 = vmatpush1.bf16.msra.mxu0 0
    %471 = vmatprep.subr.bf16.mxu0 0
    %472 = vmatpush1.bf16.msra.mxu0 0
    %473 = vmatprep.subr.bf16.mxu0 0
    %474 = vmatpush1.bf16.msra.mxu0 0
    %475 = vmatprep.subr.bf16.mxu0 0
    %476 = vmatpush1.bf16.msra.mxu0 0
    %477 = vmatprep.subr.bf16.mxu0 0
    %478 = vmatpush1.bf16.msra.mxu0 0
    %479 = vmatprep.subr.bf16.mxu0 0
    %480 = vmatpush1.bf16.msra.mxu0 0
    %481 = vmatprep.subr.bf16.mxu0 0
    %482 = vmatpush1.bf16.msra.mxu0 0
    %483 = vmatprep.subr.bf16.mxu0 0
    %484 = vmatpush1.bf16.msra.mxu0 0
    %485 = vmatprep.subr.bf16.mxu0 0
    %486 = vmatpush1.bf16.msra.mxu0 0
    %487 = vmatprep.subr.bf16.mxu0 0
    %488 = vmatpush1.bf16.msra.mxu0 0
    %489 = vmatprep.subr.bf16.mxu0 0
    %490 = vmatpush1.bf16.msra.mxu0 0
    %491 = vmatprep.mubr.bf16.mxu0 0
    %492 = vmatmul.mubr.bf16.gmra.mrb[0].mxu0 %v457
    %v493 = vpop.f32.mrb[0].mxu0
    %v494 = vadd.f32 0.0, %v493
    %v495 = vpop.f32.mrb[0].mxu0
    %v496 = vpop.f32.mrb[0].mxu0
    %v497 = vadd.f32 0.0, %v496
    %v498 = vpop.f32.mrb[0].mxu0
    %499 = vdwg.mxu0
    %v501 = vsel %vm354, %v377, 0
    %503 = vmatprep.subr.bf16.mxu0 0
    %504 = vmatpush1.bf16.msra.mxu0 %v380
    %505 = vmatprep.subr.bf16.mxu0 0
    %506 = vmatpush1.bf16.msra.mxu0 0
    %507 = vmatprep.subr.bf16.mxu0 0
    %508 = vmatpush1.bf16.msra.mxu0 0
    %509 = vmatprep.subr.bf16.mxu0 0
    %510 = vmatpush1.bf16.msra.mxu0 0
    %511 = vmatprep.subr.bf16.mxu0 0
    %512 = vmatpush1.bf16.msra.mxu0 0
    %513 = vmatprep.subr.bf16.mxu0 0
    %514 = vmatpush1.bf16.msra.mxu0 0
    %515 = vmatprep.subr.bf16.mxu0 0
    %516 = vmatpush1.bf16.msra.mxu0 0
    %517 = vmatprep.subr.bf16.mxu0 0
    %518 = vmatpush1.bf16.msra.mxu0 0
    %519 = vmatprep.subr.bf16.mxu0 0
    %520 = vmatpush1.bf16.msra.mxu0 0
    %521 = vmatprep.subr.bf16.mxu0 0
    %522 = vmatpush1.bf16.msra.mxu0 0
    %523 = vmatprep.subr.bf16.mxu0 0
    %524 = vmatpush1.bf16.msra.mxu0 0
    %525 = vmatprep.subr.bf16.mxu0 0
    %526 = vmatpush1.bf16.msra.mxu0 0
    %527 = vmatprep.subr.bf16.mxu0 0
    %528 = vmatpush1.bf16.msra.mxu0 0
    %529 = vmatprep.subr.bf16.mxu0 0
    %530 = vmatpush1.bf16.msra.mxu0 0
    %531 = vmatprep.subr.bf16.mxu0 0
    %532 = vmatpush1.bf16.msra.mxu0 0
    %533 = vmatprep.subr.bf16.mxu0 0
    %534 = vmatpush1.bf16.msra.mxu0 0
    %535 = vmatprep.mubr.bf16.mxu0 0
    %536 = vmatmul.mubr.bf16.gmra.mrb[0].mxu0 %v501
    %v537 = vpop.f32.mrb[0].mxu0
    %v538 = vadd.f32 %v494, %v537
    %v539 = vpop.f32.mrb[0].mxu0
    %v540 = vpop.f32.mrb[0].mxu0
    %v541 = vadd.f32 %v497, %v540
    %v542 = vpop.f32.mrb[0].mxu0
    %543 = vdwg.mxu0
    %v544 = vld [vmem:[#allocation5 + $0x2a] sm:$0x1]
    %v545 = vlaneseq
    %v546 = vshrl.u32 %v545, 7
    %v547 = vsub.s32 0, %v546
    %v548 = vrot.slane %v544, %v547
    %v549 = vmul.f32 %v174, %v548
    %v550 = vmul.f32 %v177, %v548
    %v551 = vpack.c.bf16 %v550, %v549
    %552 = vmatprep.subr.bf16.mxu0 0
    %553 = vmatpush1.bf16.xpose.msra.mxu0 %v304
    %554 = vmatprep.subr.bf16.mxu0 0
    %555 = vmatpush1.bf16.xpose.msra.mxu0 0
    %556 = vmatprep.subr.bf16.mxu0 0
    %557 = vmatpush1.bf16.xpose.msra.mxu0 0
    %558 = vmatprep.subr.bf16.mxu0 0
    %559 = vmatpush1.bf16.xpose.msra.mxu0 0
    %560 = vmatprep.subr.bf16.mxu0 0
    %561 = vmatpush1.bf16.xpose.msra.mxu0 0
    %562 = vmatprep.subr.bf16.mxu0 0
    %563 = vmatpush1.bf16.xpose.msra.mxu0 0
    %564 = vmatprep.subr.bf16.mxu0 0
    %565 = vmatpush1.bf16.xpose.msra.mxu0 0
    %566 = vmatprep.subr.bf16.mxu0 0
    %567 = vmatpush1.bf16.xpose.msra.mxu0 0
    %568 = vmatprep.subr.bf16.mxu0 0
    %569 = vmatpush1.bf16.xpose.msra.mxu0 0
    %570 = vmatprep.subr.bf16.mxu0 0
    %571 = vmatpush1.bf16.xpose.msra.mxu0 0
    %572 = vmatprep.subr.bf16.mxu0 0
    %573 = vmatpush1.bf16.xpose.msra.mxu0 0
    %574 = vmatprep.subr.bf16.mxu0 0
    %575 = vmatpush1.bf16.xpose.msra.mxu0 0
    %576 = vmatprep.subr.bf16.mxu0 0
    %577 = vmatpush1.bf16.xpose.msra.mxu0 0
    %578 = vmatprep.subr.bf16.mxu0 0
    %579 = vmatpush1.bf16.xpose.msra.mxu0 0
    %580 = vmatprep.subr.bf16.mxu0 0
    %581 = vmatpush1.bf16.xpose.msra.mxu0 0
    %582 = vmatprep.subr.bf16.mxu0 0
    %583 = vmatpush1.bf16.xpose.msra.mxu0 0
    %584 = vmatprep.mubr.bf16.mxu0 0
    %585 = vmatmul.mubr.bf16.gmra.mrb[0].mxu0 %v551
    %v586 = vpop.f32.mrb[0].mxu0
    %v587 = vadd.f32 %v111, %v586
    %v588 = vpop.f32.mrb[0].mxu0
    %v589 = vpop.f32.mrb[0].mxu0
    %v590 = vadd.f32 %v112, %v589
    %v591 = vpop.f32.mrb[0].mxu0
    %592 = vdwg.mxu0
    %v593 = vsel %vm354, %v587, -inf
    %594 = vmax.xlane.f32.xlu0 %v593
    %v595 = vpop.xlane.xlu0 %594
    %v596 = vsel %vm354, %v590, -inf
    %597 = vmax.xlane.f32.xlu0 %v596
    %v598 = vpop.xlane.xlu0 %597
    %v599 = vsub.f32 %v587, %v595
    %v600 = vsub.f32 %v590, %v598
    %v601 = vmul.f32 %v599, 1.442695
    %v602 = vpow.pop %v601
    %v603 = vmul.f32 %v600, 1.442695
    %v604 = vpow.pop %v603
    %v605 = vsel %vm354, %v602, 0.0
    %606 = vadd.xlane.f32.xlu0 %v605
    %v607 = vpop.xlane.xlu0 %606
    %v608 = vsel %vm354, %v604, 0.0
    %609 = vadd.xlane.f32.xlu0 %v608
    %v610 = vpop.xlane.xlu0 %609
    %v611 = vrcp.pop %v607
    %v612 = vrcp.pop %v610
    %v613 = vmul.f32 %v602, %v611
    %v614 = vmul.f32 %v604, %v612
    %v615 = vpack.c.bf16 %v614, %v613
    %v616 = vmul.f32 %v298, %v548
    %v617 = vmul.f32 %v301, %v548
    %v618 = vpack.c.bf16 %v617, %v616
    %v620 = vsel %vm354, %v615, 0
    %622 = vmatprep.subr.bf16.mxu0 0
    %623 = vmatpush1.bf16.msra.mxu0 %v618
    %624 = vmatprep.subr.bf16.mxu0 0
    %625 = vmatpush1.bf16.msra.mxu0 0
    %626 = vmatprep.subr.bf16.mxu0 0
    %627 = vmatpush1.bf16.msra.mxu0 0
    %628 = vmatprep.subr.bf16.mxu0 0
    %629 = vmatpush1.bf16.msra.mxu0 0
    %630 = vmatprep.subr.bf16.mxu0 0
    %631 = vmatpush1.bf16.msra.mxu0 0
    %632 = vmatprep.subr.bf16.mxu0 0
    %633 = vmatpush1.bf16.msra.mxu0 0
    %634 = vmatprep.subr.bf16.mxu0 0
    %635 = vmatpush1.bf16.msra.mxu0 0
    %636 = vmatprep.subr.bf16.mxu0 0
    %637 = vmatpush1.bf16.msra.mxu0 0
    %638 = vmatprep.subr.bf16.mxu0 0
    %639 = vmatpush1.bf16.msra.mxu0 0
    %640 = vmatprep.subr.bf16.mxu0 0
    %641 = vmatpush1.bf16.msra.mxu0 0
    %642 = vmatprep.subr.bf16.mxu0 0
    %643 = vmatpush1.bf16.msra.mxu0 0
    %644 = vmatprep.subr.bf16.mxu0 0
    %645 = vmatpush1.bf16.msra.mxu0 0
    %646 = vmatprep.subr.bf16.mxu0 0
    %647 = vmatpush1.bf16.msra.mxu0 0
    %648 = vmatprep.subr.bf16.mxu0 0
    %649 = vmatpush1.bf16.msra.mxu0 0
    %650 = vmatprep.subr.bf16.mxu0 0
    %651 = vmatpush1.bf16.msra.mxu0 0
    %652 = vmatprep.subr.bf16.mxu0 0
    %653 = vmatpush1.bf16.msra.mxu0 0
    %654 = vmatprep.mubr.bf16.mxu0 0
    %655 = vmatmul.mubr.bf16.gmra.mrb[0].mxu0 %v620
    %v656 = vpop.f32.mrb[0].mxu0
    %v657 = vadd.f32 0.0, %v656
    %v658 = vpop.f32.mrb[0].mxu0
    %v659 = vpop.f32.mrb[0].mxu0
    %v660 = vadd.f32 0.0, %v659
    %v661 = vpop.f32.mrb[0].mxu0
    %662 = vdwg.mxu0
    %v663 = vadd.f32 %v538, %v657
    %v664 = vadd.f32 %v541, %v660
    %v665 = vld [vmem:[#allocation5 + $0x2b] sm:$0x1]
    %v666 = vlaneseq
    %v667 = vshrl.u32 %v666, 7
    %v668 = vsub.s32 0, %v667
    %v669 = vrot.slane %v665, %v668
    %v670 = vmul.f32 %v174, %v669
    %v671 = vmul.f32 %v177, %v669
    %v672 = vpack.c.bf16 %v671, %v670
    %673 = vmatprep.subr.bf16.mxu0 0
    %674 = vmatpush1.bf16.xpose.msra.mxu0 %v304
    %675 = vmatprep.subr.bf16.mxu0 0
    %676 = vmatpush1.bf16.xpose.msra.mxu0 0
    %677 = vmatprep.subr.bf16.mxu0 0
    %678 = vmatpush1.bf16.xpose.msra.mxu0 0
    %679 = vmatprep.subr.bf16.mxu0 0
    %680 = vmatpush1.bf16.xpose.msra.mxu0 0
    %681 = vmatprep.subr.bf16.mxu0 0
    %682 = vmatpush1.bf16.xpose.msra.mxu0 0
    %683 = vmatprep.subr.bf16.mxu0 0
    %684 = vmatpush1.bf16.xpose.msra.mxu0 0
    %685 = vmatprep.subr.bf16.mxu0 0
    %686 = vmatpush1.bf16.xpose.msra.mxu0 0
    %687 = vmatprep.subr.bf16.mxu0 0
    %688 = vmatpush1.bf16.xpose.msra.mxu0 0
    %689 = vmatprep.subr.bf16.mxu0 0
    %690 = vmatpush1.bf16.xpose.msra.mxu0 0
    %691 = vmatprep.subr.bf16.mxu0 0
    %692 = vmatpush1.bf16.xpose.msra.mxu0 0
    %693 = vmatprep.subr.bf16.mxu0 0
    %694 = vmatpush1.bf16.xpose.msra.mxu0 0
    %695 = vmatprep.subr.bf16.mxu0 0
    %696 = vmatpush1.bf16.xpose.msra.mxu0 0
    %697 = vmatprep.subr.bf16.mxu0 0
    %698 = vmatpush1.bf16.xpose.msra.mxu0 0
    %699 = vmatprep.subr.bf16.mxu0 0
    %700 = vmatpush1.bf16.xpose.msra.mxu0 0
    %701 = vmatprep.subr.bf16.mxu0 0
    %702 = vmatpush1.bf16.xpose.msra.mxu0 0
    %703 = vmatprep.subr.bf16.mxu0 0
    %704 = vmatpush1.bf16.xpose.msra.mxu0 0
    %705 = vmatprep.mubr.bf16.mxu0 0
    %706 = vmatmul.mubr.bf16.gmra.mrb[0].mxu0 %v672
    %v707 = vpop.f32.mrb[0].mxu0
    %v708 = vadd.f32 %v111, %v707
    %v709 = vpop.f32.mrb[0].mxu0
    %v710 = vpop.f32.mrb[0].mxu0
    %v711 = vadd.f32 %v112, %v710
    %v712 = vpop.f32.mrb[0].mxu0
    %713 = vdwg.mxu0
    %v714 = vsel %vm354, %v708, -inf
    %715 = vmax.xlane.f32.xlu0 %v714
    %v716 = vpop.xlane.xlu0 %715
    %v717 = vsel %vm354, %v711, -inf
    %718 = vmax.xlane.f32.xlu0 %v717
    %v719 = vpop.xlane.xlu0 %718
    %v720 = vsub.f32 %v708, %v716
    %v721 = vsub.f32 %v711, %v719
    %v722 = vmul.f32 %v720, 1.442695
    %v723 = vpow.pop %v722
    %v724 = vmul.f32 %v721, 1.442695
    %v725 = vpow.pop %v724
    %v726 = vsel %vm354, %v723, 0.0
    %727 = vadd.xlane.f32.xlu0 %v726
    %v728 = vpop.xlane.xlu0 %727
    %v729 = vsel %vm354, %v725, 0.0
    %730 = vadd.xlane.f32.xlu0 %v729
    %v731 = vpop.xlane.xlu0 %730
    %v732 = vrcp.pop %v728
    %v733 = vrcp.pop %v731
    %v734 = vmul.f32 %v723, %v732
    %v735 = vmul.f32 %v725, %v733
    %v736 = vpack.c.bf16 %v735, %v734
    %v737 = vmul.f32 %v298, %v669
    %v738 = vmul.f32 %v301, %v669
    %v739 = vpack.c.bf16 %v738, %v737
    %v741 = vsel %vm354, %v736, 0
    %743 = vmatprep.subr.bf16.mxu0 0
    %744 = vmatpush1.bf16.msra.mxu0 %v739
    %745 = vmatprep.subr.bf16.mxu0 0
    %746 = vmatpush1.bf16.msra.mxu0 0
    %747 = vmatprep.subr.bf16.mxu0 0
    %748 = vmatpush1.bf16.msra.mxu0 0
    %749 = vmatprep.subr.bf16.mxu0 0
    %750 = vmatpush1.bf16.msra.mxu0 0
    %751 = vmatprep.subr.bf16.mxu0 0
    %752 = vmatpush1.bf16.msra.mxu0 0
    %753 = vmatprep.subr.bf16.mxu0 0
    %754 = vmatpush1.bf16.msra.mxu0 0
    %755 = vmatprep.subr.bf16.mxu0 0
    %756 = vmatpush1.bf16.msra.mxu0 0
    %757 = vmatprep.subr.bf16.mxu0 0
    %758 = vmatpush1.bf16.msra.mxu0 0
    %759 = vmatprep.subr.bf16.mxu0 0
    %760 = vmatpush1.bf16.msra.mxu0 0
    %761 = vmatprep.subr.bf16.mxu0 0
    %762 = vmatpush1.bf16.msra.mxu0 0
    %763 = vmatprep.subr.bf16.mxu0 0
    %764 = vmatpush1.bf16.msra.mxu0 0
    %765 = vmatprep.subr.bf16.mxu0 0
    %766 = vmatpush1.bf16.msra.mxu0 0
    %767 = vmatprep.subr.bf16.mxu0 0
    %768 = vmatpush1.bf16.msra.mxu0 0
    %769 = vmatprep.subr.bf16.mxu0 0
    %770 = vmatpush1.bf16.msra.mxu0 0
    %771 = vmatprep.subr.bf16.mxu0 0
    %772 = vmatpush1.bf16.msra.mxu0 0
    %773 = vmatprep.subr.bf16.mxu0 0
    %774 = vmatpush1.bf16.msra.mxu0 0
    %775 = vmatprep.mubr.bf16.mxu0 0
    %776 = vmatmul.mubr.bf16.gmra.mrb[0].mxu0 %v741
    %v777 = vpop.f32.mrb[0].mxu0
    %v778 = vadd.f32 0.0, %v777
    %v779 = vpop.f32.mrb[0].mxu0
    %v780 = vpop.f32.mrb[0].mxu0
    %v781 = vadd.f32 0.0, %v780
    %v782 = vpop.f32.mrb[0].mxu0
    %783 = vdwg.mxu0
    %v784 = vadd.f32 %v663, %v778
    %v785 = vadd.f32 %v664, %v781
    %v786 = vpack.c.bf16 %v785, %v784
    %v787 = vld [vmem:[#allocation2 + $0x40] sm:$0xf]
    %v788 = vld [vmem:[#allocation2 + $0x44] sm:$0xf]
    %v789 = vld [vmem:[#allocation2 + $0x48] sm:$0xf]
    %v790 = vld [vmem:[#allocation2 + $0x4c] sm:$0xf]
    %v791 = vld [vmem:[#allocation5 + $0x3b] sm:$0x1]
    %v792 = vlaneseq
    %v793 = vshrl.u32 %v792, 7
    %v794 = vsub.s32 0, %v793
    %v795 = vrot.slane %v791, %v794
    %v800 = vunpack.c.l.b16 %v787
    %v801 = vunpack.c.l.b16 %v788
    %v802 = vunpack.c.l.b16 %v789
    %v803 = vunpack.c.l.b16 %v790
    %v804 = vpack.c.b16 %v801, %v800
    %v805 = vpack.c.b16 %v803, %v802
    %808 = vmatprep.subr.bf16.mxu0 0
    %809 = vmatpush1.bf16.xpose.msra.mxu0 %v804
    %810 = vmatprep.subr.bf16.mxu0 0
    %811 = vmatpush1.bf16.xpose.msra.mxu0 %v805
    %812 = vmatprep.subr.bf16.mxu0 0
    %813 = vmatpush1.bf16.xpose.msra.mxu0 0
    %814 = vmatprep.subr.bf16.mxu0 0
    %815 = vmatpush1.bf16.xpose.msra.mxu0 0
    %816 = vmatprep.subr.bf16.mxu0 0
    %817 = vmatpush1.bf16.xpose.msra.mxu0 0
    %818 = vmatprep.subr.bf16.mxu0 0
    %819 = vmatpush1.bf16.xpose.msra.mxu0 0
    %820 = vmatprep.subr.bf16.mxu0 0
    %821 = vmatpush1.bf16.xpose.msra.mxu0 0
    %822 = vmatprep.subr.bf16.mxu0 0
    %823 = vmatpush1.bf16.xpose.msra.mxu0 0
    %824 = vmatprep.subr.bf16.mxu0 0
    %825 = vmatpush1.bf16.xpose.msra.mxu0 0
    %826 = vmatprep.subr.bf16.mxu0 0
    %827 = vmatpush1.bf16.xpose.msra.mxu0 0
    %828 = vmatprep.subr.bf16.mxu0 0
    %829 = vmatpush1.bf16.xpose.msra.mxu0 0
    %830 = vmatprep.subr.bf16.mxu0 0
    %831 = vmatpush1.bf16.xpose.msra.mxu0 0
    %832 = vmatprep.subr.bf16.mxu0 0
    %833 = vmatpush1.bf16.xpose.msra.mxu0 0
    %834 = vmatprep.subr.bf16.mxu0 0
    %835 = vmatpush1.bf16.xpose.msra.mxu0 0
    %836 = vmatprep.subr.bf16.mxu0 0
    %837 = vmatpush1.bf16.xpose.msra.mxu0 0
    %838 = vmatprep.subr.bf16.mxu0 0
    %839 = vmatpush1.bf16.xpose.msra.mxu0 0
    %840 = vmatprep.mubr.bf16.mxu0 0
    %841 = vmatmul.mubr.bf16.gmra.mrb[0].mxu0 %v786
    %v842 = vpop.f32.mrb[0].mxu0
    %v843 = vadd.f32 %v795, %v842
    %v844 = vpop.f32.mrb[0].mxu0
    %v845 = vpop.f32.mrb[0].mxu0
    %v846 = vadd.f32 %v795, %v845
    %v847 = vpop.f32.mrb[0].mxu0
    %848 = vdwg.mxu0
    %v849 = vadd.f32 %v843, %v105
    %v850 = vadd.f32 %v846, %v108
    %v851 = vld [vmem:[#allocation5 + $0x3c] sm:$0x1]
    %v852 = vld [vmem:[#allocation5 + $0x3d] sm:$0x1]
    %v853 = vsel %vm135, %v849, 0.0
    %854 = vadd.xlane.f32.xlu0 %v853
    %v855 = vpop.xlane.xlu0 %854
    %v856 = vsel %vm135, %v850, 0.0
    %857 = vadd.xlane.f32.xlu0 %v856
    %v858 = vpop.xlane.xlu0 %857
    %v859 = vrcp.pop 32.0
    %v860 = vmul.f32 %v855, %v859
    %v861 = vmul.f32 %v858, %v859
    %v862 = vsub.f32 %v849, %v860
    %v863 = vsub.f32 %v850, %v861
    %v864 = vmul.f32 %v862, %v862
    %v865 = vmul.f32 %v863, %v863
    %v866 = vsel %vm135, %v864, 0.0
    %867 = vadd.xlane.f32.xlu0 %v866
    %v868 = vpop.xlane.xlu0 %867
    %v869 = vsel %vm135, %v865, 0.0
    %870 = vadd.xlane.f32.xlu0 %v869
    %v871 = vpop.xlane.xlu0 %870
    %v872 = vmul.f32 %v868, %v859
    %v873 = vmul.f32 %v871, %v859
    %v874 = vadd.f32 %v872, 1e-06
    %v875 = vadd.f32 %v873, 1e-06
    %v876 = vrsqrt.pop %v874
    %v877 = vrsqrt.pop %v875
    %v878 = vmul.f32 %v862, %v876
    %v879 = vmul.f32 %v863, %v877
    %v880 = vlaneseq
    %v881 = vshrl.u32 %v880, 7
    %v882 = vsub.s32 0, %v881
    %v883 = vrot.slane %v851, %v882
    %v884 = vmul.f32 %v878, %v883
    %v885 = vmul.f32 %v879, %v883
    %v886 = vlaneseq
    %v887 = vshrl.u32 %v886, 7
    %v888 = vsub.s32 0, %v887
    %v889 = vrot.slane %v852, %v888
    %v890 = vadd.f32 %v884, %v889
    %v891 = vadd.f32 %v885, %v889
    %v892 = vpack.c.bf16 %v891, %v890
    %v893 = vld [vmem:[#allocation2 + $0x50] sm:$0xf]
    %v894 = vld [vmem:[#allocation2 + $0x54] sm:$0xf]
    %v895 = vld [vmem:[#allocation2 + $0x58] sm:$0xf]
    %v896 = vld [vmem:[#allocation2 + $0x5c] sm:$0xf]
    %v897 = vld [vmem:[#allocation5 + $0x3e] sm:$0x1]
    %v898 = vlaneseq
    %v899 = vshrl.u32 %v898, 7
    %v900 = vsub.s32 0, %v899
    %v901 = vrot.slane %v897, %v900
    %v906 = vunpack.c.l.b16 %v893
    %v907 = vunpack.c.l.b16 %v894
    %v908 = vunpack.c.l.b16 %v895
    %v909 = vunpack.c.l.b16 %v896
    %v910 = vpack.c.b16 %v907, %v906
    %v911 = vpack.c.b16 %v909, %v908
    %v915 = vsel %vm135, %v892, 0
    %917 = vmatprep.subr.bf16.mxu0 0
    %918 = vmatpush1.bf16.msra.mxu0 %v910
    %919 = vmatprep.subr.bf16.mxu0 0
    %920 = vmatpush1.bf16.msra.mxu0 %v911
    %921 = vmatprep.subr.bf16.mxu0 0
    %922 = vmatpush1.bf16.msra.mxu0 0
    %923 = vmatprep.subr.bf16.mxu0 0
    %924 = vmatpush1.bf16.msra.mxu0 0
    %925 = vmatprep.subr.bf16.mxu0 0
    %926 = vmatpush1.bf16.msra.mxu0 0
    %927 = vmatprep.subr.bf16.mxu0 0
    %928 = vmatpush1.bf16.msra.mxu0 0
    %929 = vmatprep.subr.bf16.mxu0 0
    %930 = vmatpush1.bf16.msra.mxu0 0
    %931 = vmatprep.subr.bf16.mxu0 0
    %932 = vmatpush1.bf16.msra.mxu0 0
    %933 = vmatprep.subr.bf16.mxu0 0
    %934 = vmatpush1.bf16.msra.mxu0 0
    %935 = vmatprep.subr.bf16.mxu0 0
    %936 = vmatpush1.bf16.msra.mxu0 0
    %937 = vmatprep.subr.bf16.mxu0 0
    %938 = vmatpush1.bf16.msra.mxu0 0
    %939 = vmatprep.subr.bf16.mxu0 0
    %940 = vmatpush1.bf16.msra.mxu0 0
    %941 = vmatprep.subr.bf16.mxu0 0
    %942 = vmatpush1.bf16.msra.mxu0 0
    %943 = vmatprep.subr.bf16.mxu0 0
    %944 = vmatpush1.bf16.msra.mxu0 0
    %945 = vmatprep.subr.bf16.mxu0 0
    %946 = vmatpush1.bf16.msra.mxu0 0
    %947 = vmatprep.subr.bf16.mxu0 0
    %948 = vmatpush1.bf16.msra.mxu0 0
    %949 = vmatprep.mubr.bf16.mxu0 0
    %950 = vmatmul.mubr.bf16.gmra.mrb[0].mxu0 %v915
    %v951 = vpop.f32.mrb[0].mxu0
    %v952 = vadd.f32 %v901, %v951
    %v953 = vpop.f32.mrb[0].mxu0
    %v954 = vpop.f32.mrb[0].mxu0
    %v955 = vadd.f32 %v901, %v954
    %v956 = vpop.f32.mrb[0].mxu0
    %957 = vdwg.mxu0
    %v958 = vmax.f32 %v952, 0.0
    %v959 = vmax.f32 %v955, 0.0
    %v960 = vpack.c.bf16 %v959, %v958
    %v961 = vld [vmem:[#allocation2 + $0x60] sm:$0xf]
    %v962 = vld [vmem:[#allocation2 + $0x64] sm:$0xf]
    %v963 = vld [vmem:[#allocation2 + $0x68] sm:$0xf]
    %v964 = vld [vmem:[#allocation2 + $0x6c] sm:$0xf]
    %v965 = vld [vmem:[#allocation5 + $0x3f] sm:$0x1]
    %v966 = vlaneseq
    %v967 = vshrl.u32 %v966, 7
    %v968 = vsub.s32 0, %v967
    %v969 = vrot.slane %v965, %v968
    %v974 = vunpack.c.l.b16 %v961
    %v975 = vunpack.c.l.b16 %v962
    %v976 = vunpack.c.l.b16 %v963
    %v977 = vunpack.c.l.b16 %v964
    %v978 = vpack.c.b16 %v975, %v974
    %v979 = vpack.c.b16 %v977, %v976
    %982 = vmatprep.subr.bf16.mxu0 0
    %983 = vmatpush1.bf16.xpose.msra.mxu0 %v978
    %984 = vmatprep.subr.bf16.mxu0 0
    %985 = vmatpush1.bf16.xpose.msra.mxu0 %v979
    %986 = vmatprep.subr.bf16.mxu0 0
    %987 = vmatpush1.bf16.xpose.msra.mxu0 0
    %988 = vmatprep.subr.bf16.mxu0 0
    %989 = vmatpush1.bf16.xpose.msra.mxu0 0
    %990 = vmatprep.subr.bf16.mxu0 0
    %991 = vmatpush1.bf16.xpose.msra.mxu0 0
    %992 = vmatprep.subr.bf16.mxu0 0
    %993 = vmatpush1.bf16.xpose.msra.mxu0 0
    %994 = vmatprep.subr.bf16.mxu0 0
    %995 = vmatpush1.bf16.xpose.msra.mxu0 0
    %996 = vmatprep.subr.bf16.mxu0 0
    %997 = vmatpush1.bf16.xpose.msra.mxu0 0
    %998 = vmatprep.subr.bf16.mxu0 0
    %999 = vmatpush1.bf16.xpose.msra.mxu0 0
    %1000 = vmatprep.subr.bf16.mxu0 0
    %1001 = vmatpush1.bf16.xpose.msra.mxu0 0
    %1002 = vmatprep.subr.bf16.mxu0 0
    %1003 = vmatpush1.bf16.xpose.msra.mxu0 0
    %1004 = vmatprep.subr.bf16.mxu0 0
    %1005 = vmatpush1.bf16.xpose.msra.mxu0 0
    %1006 = vmatprep.subr.bf16.mxu0 0
    %1007 = vmatpush1.bf16.xpose.msra.mxu0 0
    %1008 = vmatprep.subr.bf16.mxu0 0
    %1009 = vmatpush1.bf16.xpose.msra.mxu0 0
    %1010 = vmatprep.subr.bf16.mxu0 0
    %1011 = vmatpush1.bf16.xpose.msra.mxu0 0
    %1012 = vmatprep.subr.bf16.mxu0 0
    %1013 = vmatpush1.bf16.xpose.msra.mxu0 0
    %1014 = vmatprep.mubr.bf16.mxu0 0
    %1015 = vmatmul.mubr.bf16.gmra.mrb[0].mxu0 %v960
    %v1016 = vpop.f32.mrb[0].mxu0
    %v1017 = vadd.f32 %v969, %v1016
    %v1018 = vpop.f32.mrb[0].mxu0
    %v1019 = vpop.f32.mrb[0].mxu0
    %v1020 = vadd.f32 %v969, %v1019
    %v1021 = vpop.f32.mrb[0].mxu0
    %1022 = vdwg.mxu0
    %v1023 = vadd.f32 %v1017, %v890
    %v1024 = vadd.f32 %v1020, %v891
    %v1025 = vld [vmem:[#allocation5 + $0x40] sm:$0x1]
    %v1026 = vld [vmem:[#allocation5 + $0x41] sm:$0x1]
    %v1027 = vsel %vm135, %v1023, 0.0
    %1028 = vadd.xlane.f32.xlu0 %v1027
    %v1029 = vpop.xlane.xlu0 %1028
    %v1030 = vsel %vm135, %v1024, 0.0
    %1031 = vadd.xlane.f32.xlu0 %v1030
    %v1032 = vpop.xlane.xlu0 %1031
    %v1033 = vmul.f32 %v1029, %v859
    %v1034 = vmul.f32 %v1032, %v859
    %v1035 = vsub.f32 %v1023, %v1033
    %v1036 = vsub.f32 %v1024, %v1034
    %v1037 = vmul.f32 %v1035, %v1035
    %v1038 = vmul.f32 %v1036, %v1036
    %v1039 = vsel %vm135, %v1037, 0.0
    %1040 = vadd.xlane.f32.xlu0 %v1039
    %v1041 = vpop.xlane.xlu0 %1040
    %v1042 = vsel %vm135, %v1038, 0.0
    %1043 = vadd.xlane.f32.xlu0 %v1042
    %v1044 = vpop.xlane.xlu0 %1043
    %v1045 = vmul.f32 %v1041, %v859
    %v1046 = vmul.f32 %v1044, %v859
    %v1047 = vadd.f32 %v1045, 1e-06
    %v1048 = vadd.f32 %v1046, 1e-06
    %v1049 = vrsqrt.pop %v1047
    %v1050 = vrsqrt.pop %v1048
    %v1051 = vmul.f32 %v1035, %v1049
    %v1052 = vmul.f32 %v1036, %v1050
    %v1053 = vlaneseq
    %v1054 = vshrl.u32 %v1053, 7
    %v1055 = vsub.s32 0, %v1054
    %v1056 = vrot.slane %v1025, %v1055
    %v1057 = vmul.f32 %v1051, %v1056
    %v1058 = vmul.f32 %v1052, %v1056
    %v1059 = vlaneseq
    %v1060 = vshrl.u32 %v1059, 7
    %v1061 = vsub.s32 0, %v1060
    %v1062 = vrot.slane %v1026, %v1061
    %v1063 = vadd.f32 %v1057, %v1062
    %v1064 = vadd.f32 %v1058, %v1062
    %v1065 = vpack.c.bf16 %v1064, %v1063
    %v1066 = vld [vmem:[#allocation2 + $0x70] sm:$0xf]
    %v1067 = vld [vmem:[#allocation2 + $0x74] sm:$0xf]
    %v1068 = vld [vmem:[#allocation2 + $0x78] sm:$0xf]
    %v1069 = vld [vmem:[#allocation2 + $0x7c] sm:$0xf]
    %v1070 = vld [vmem:[#allocation5 + $0x48] sm:$0x1]
    %v1071 = vlaneseq
    %v1072 = vshrl.u32 %v1071, 7
    %v1073 = vsub.s32 0, %v1072
    %v1074 = vrot.slane %v1070, %v1073
    %v1079 = vunpack.c.l.b16 %v1066
    %v1080 = vunpack.c.l.b16 %v1067
    %v1081 = vunpack.c.l.b16 %v1068
    %v1082 = vunpack.c.l.b16 %v1069
    %v1083 = vpack.c.b16 %v1080, %v1079
    %v1084 = vpack.c.b16 %v1082, %v1081
    %v1088 = vsel %vm135, %v1065, 0
    %1090 = vmatprep.subr.bf16.mxu0 0
    %1091 = vmatpush1.bf16.msra.mxu0 %v1083
    %1092 = vmatprep.subr.bf16.mxu0 0
    %1093 = vmatpush1.bf16.msra.mxu0 %v1084
    %1094 = vmatprep.subr.bf16.mxu0 0
    %1095 = vmatpush1.bf16.msra.mxu0 0
    %1096 = vmatprep.subr.bf16.mxu0 0
    %1097 = vmatpush1.bf16.msra.mxu0 0
    %1098 = vmatprep.subr.bf16.mxu0 0
    %1099 = vmatpush1.bf16.msra.mxu0 0
    %1100 = vmatprep.subr.bf16.mxu0 0
    %1101 = vmatpush1.bf16.msra.mxu0 0
    %1102 = vmatprep.subr.bf16.mxu0 0
    %1103 = vmatpush1.bf16.msra.mxu0 0
    %1104 = vmatprep.subr.bf16.mxu0 0
    %1105 = vmatpush1.bf16.msra.mxu0 0
    %1106 = vmatprep.subr.bf16.mxu0 0
    %1107 = vmatpush1.bf16.msra.mxu0 0
    %1108 = vmatprep.subr.bf16.mxu0 0
    %1109 = vmatpush1.bf16.msra.mxu0 0
    %1110 = vmatprep.subr.bf16.mxu0 0
    %1111 = vmatpush1.bf16.msra.mxu0 0
    %1112 = vmatprep.subr.bf16.mxu0 0
    %1113 = vmatpush1.bf16.msra.mxu0 0
    %1114 = vmatprep.subr.bf16.mxu0 0
    %1115 = vmatpush1.bf16.msra.mxu0 0
    %1116 = vmatprep.subr.bf16.mxu0 0
    %1117 = vmatpush1.bf16.msra.mxu0 0
    %1118 = vmatprep.subr.bf16.mxu0 0
    %1119 = vmatpush1.bf16.msra.mxu0 0
    %1120 = vmatprep.subr.bf16.mxu0 0
    %1121 = vmatpush1.bf16.msra.mxu0 0
    %1122 = vmatprep.mubr.bf16.mxu0 0
    %1123 = vmatmul.mubr.bf16.gmra.mrb[0].mxu0 %v1088
    %v1124 = vpop.f32.mrb[0].mxu0
    %v1125 = vadd.f32 %v1074, %v1124
    %v1126 = vpop.f32.mrb[0].mxu0
    %v1127 = vpop.f32.mrb[0].mxu0
    %v1128 = vadd.f32 %v1074, %v1127
    %v1129 = vpop.f32.mrb[0].mxu0
    %1130 = vdwg.mxu0
    %v1131 = vld [vmem:[#allocation2 + $0x80] sm:$0xf]
    %v1132 = vld [vmem:[#allocation2 + $0x84] sm:$0xf]
    %v1133 = vld [vmem:[#allocation2 + $0x88] sm:$0xf]
    %v1134 = vld [vmem:[#allocation2 + $0x8c] sm:$0xf]
    %v1135 = vld [vmem:[#allocation5 + $0x49] sm:$0x1]
    %v1136 = vlaneseq
    %v1137 = vshrl.u32 %v1136, 7
    %v1138 = vsub.s32 0, %v1137
    %v1139 = vrot.slane %v1135, %v1138
    %v1144 = vunpack.c.l.b16 %v1131
    %v1145 = vunpack.c.l.b16 %v1132
    %v1146 = vunpack.c.l.b16 %v1133
    %v1147 = vunpack.c.l.b16 %v1134
    %v1148 = vpack.c.b16 %v1145, %v1144
    %v1149 = vpack.c.b16 %v1147, %v1146
    %1152 = vmatprep.subr.bf16.mxu0 0
    %1153 = vmatpush1.bf16.msra.mxu0 %v1148
    %1154 = vmatprep.subr.bf16.mxu0 0
    %1155 = vmatpush1.bf16.msra.mxu0 %v1149
    %1156 = vmatprep.subr.bf16.mxu0 0
    %1157 = vmatpush1.bf16.msra.mxu0 0
    %1158 = vmatprep.subr.bf16.mxu0 0
    %1159 = vmatpush1.bf16.msra.mxu0 0
    %1160 = vmatprep.subr.bf16.mxu0 0
    %1161 = vmatpush1.bf16.msra.mxu0 0
    %1162 = vmatprep.subr.bf16.mxu0 0
    %1163 = vmatpush1.bf16.msra.mxu0 0
    %1164 = vmatprep.subr.bf16.mxu0 0
    %1165 = vmatpush1.bf16.msra.mxu0 0
    %1166 = vmatprep.subr.bf16.mxu0 0
    %1167 = vmatpush1.bf16.msra.mxu0 0
    %1168 = vmatprep.subr.bf16.mxu0 0
    %1169 = vmatpush1.bf16.msra.mxu0 0
    %1170 = vmatprep.subr.bf16.mxu0 0
    %1171 = vmatpush1.bf16.msra.mxu0 0
    %1172 = vmatprep.subr.bf16.mxu0 0
    %1173 = vmatpush1.bf16.msra.mxu0 0
    %1174 = vmatprep.subr.bf16.mxu0 0
    %1175 = vmatpush1.bf16.msra.mxu0 0
    %1176 = vmatprep.subr.bf16.mxu0 0
    %1177 = vmatpush1.bf16.msra.mxu0 0
    %1178 = vmatprep.subr.bf16.mxu0 0
    %1179 = vmatpush1.bf16.msra.mxu0 0
    %1180 = vmatprep.subr.bf16.mxu0 0
    %1181 = vmatpush1.bf16.msra.mxu0 0
    %1182 = vmatprep.subr.bf16.mxu0 0
    %1183 = vmatpush1.bf16.msra.mxu0 0
    %1184 = vmatprep.mubr.bf16.mxu0 0
    %1185 = vmatmul.mubr.bf16.gmra.mrb[0].mxu0 %v1088
    %v1186 = vpop.f32.mrb[0].mxu0
    %v1187 = vadd.f32 %v1139, %v1186
    %v1188 = vpop.f32.mrb[0].mxu0
    %v1189 = vpop.f32.mrb[0].mxu0
    %v1190 = vadd.f32 %v1139, %v1189
    %v1191 = vpop.f32.mrb[0].mxu0
    %1192 = vdwg.mxu0
    %v1193 = vld [vmem:[#allocation2 + $0x90] sm:$0xf]
    %v1194 = vld [vmem:[#allocation2 + $0x94] sm:$0xf]
    %v1195 = vld [vmem:[#allocation2 + $0x98] sm:$0xf]
    %v1196 = vld [vmem:[#allocation2 + $0x9c] sm:$0xf]
    %v1197 = vld [vmem:[#allocation5 + $0x4a] sm:$0x1]
    %v1198 = vlaneseq
    %v1199 = vshrl.u32 %v1198, 7
    %v1200 = vsub.s32 0, %v1199
    %v1201 = vrot.slane %v1197, %v1200
    %v1206 = vunpack.c.l.b16 %v1193
    %v1207 = vunpack.c.l.b16 %v1194
    %v1208 = vunpack.c.l.b16 %v1195
    %v1209 = vunpack.c.l.b16 %v1196
    %v1210 = vpack.c.b16 %v1207, %v1206
    %v1211 = vpack.c.b16 %v1209, %v1208
    %1214 = vmatprep.subr.bf16.mxu0 0
    %1215 = vmatpush1.bf16.msra.mxu0 %v1210
    %1216 = vmatprep.subr.bf16.mxu0 0
    %1217 = vmatpush1.bf16.msra.mxu0 %v1211
    %1218 = vmatprep.subr.bf16.mxu0 0
    %1219 = vmatpush1.bf16.msra.mxu0 0
    %1220 = vmatprep.subr.bf16.mxu0 0
    %1221 = vmatpush1.bf16.msra.mxu0 0
    %1222 = vmatprep.subr.bf16.mxu0 0
    %1223 = vmatpush1.bf16.msra.mxu0 0
    %1224 = vmatprep.subr.bf16.mxu0 0
    %1225 = vmatpush1.bf16.msra.mxu0 0
    %1226 = vmatprep.subr.bf16.mxu0 0
    %1227 = vmatpush1.bf16.msra.mxu0 0
    %1228 = vmatprep.subr.bf16.mxu0 0
    %1229 = vmatpush1.bf16.msra.mxu0 0
    %1230 = vmatprep.subr.bf16.mxu0 0
    %1231 = vmatpush1.bf16.msra.mxu0 0
    %1232 = vmatprep.subr.bf16.mxu0 0
    %1233 = vmatpush1.bf16.msra.mxu0 0
    %1234 = vmatprep.subr.bf16.mxu0 0
    %1235 = vmatpush1.bf16.msra.mxu0 0
    %1236 = vmatprep.subr.bf16.mxu0 0
    %1237 = vmatpush1.bf16.msra.mxu0 0
    %1238 = vmatprep.subr.bf16.mxu0 0
    %1239 = vmatpush1.bf16.msra.mxu0 0
    %1240 = vmatprep.subr.bf16.mxu0 0
    %1241 = vmatpush1.bf16.msra.mxu0 0
    %1242 = vmatprep.subr.bf16.mxu0 0
    %1243 = vmatpush1.bf16.msra.mxu0 0
    %1244 = vmatprep.subr.bf16.mxu0 0
    %1245 = vmatpush1.bf16.msra.mxu0 0
    %1246 = vmatprep.mubr.bf16.mxu0 0
    %1247 = vmatmul.mubr.bf16.gmra.mrb[0].mxu0 %v1088
    %v1248 = vpop.f32.mrb[0].mxu0
    %v1249 = vadd.f32 %v1201, %v1248
    %v1250 = vpop.f32.mrb[0].mxu0
    %v1251 = vpop.f32.mrb[0].mxu0
    %v1252 = vadd.f32 %v1201, %v1251
    %v1253 = vpop.f32.mrb[0].mxu0
    %1254 = vdwg.mxu0
    %v1255 = vpack.c.bf16 %v1190, %v1187
    %v1256 = vmul.f32 %v1125, %v309
    %v1257 = vmul.f32 %v1128, %v309
    %v1258 = vpack.c.bf16 %v1257, %v1256
    %1259 = vmatprep.subr.bf16.mxu0 0
    %1260 = vmatpush1.bf16.xpose.msra.mxu0 %v1255
    %1261 = vmatprep.subr.bf16.mxu0 0
    %1262 = vmatpush1.bf16.xpose.msra.mxu0 0
    %1263 = vmatprep.subr.bf16.mxu0 0
    %1264 = vmatpush1.bf16.xpose.msra.mxu0 0
    %1265 = vmatprep.subr.bf16.mxu0 0
    %1266 = vmatpush1.bf16.xpose.msra.mxu0 0
    %1267 = vmatprep.subr.bf16.mxu0 0
    %1268 = vmatpush1.bf16.xpose.msra.mxu0 0
    %1269 = vmatprep.subr.bf16.mxu0 0
    %1270 = vmatpush1.bf16.xpose.msra.mxu0 0
    %1271 = vmatprep.subr.bf16.mxu0 0
    %1272 = vmatpush1.bf16.xpose.msra.mxu0 0
    %1273 = vmatprep.subr.bf16.mxu0 0
    %1274 = vmatpush1.bf16.xpose.msra.mxu0 0
    %1275 = vmatprep.subr.bf16.mxu0 0
    %1276 = vmatpush1.bf16.xpose.msra.mxu0 0
    %1277 = vmatprep.subr.bf16.mxu0 0
    %1278 = vmatpush1.bf16.xpose.msra.mxu0 0
    %1279 = vmatprep.subr.bf16.mxu0 0
    %1280 = vmatpush1.bf16.xpose.msra.mxu0 0
    %1281 = vmatprep.subr.bf16.mxu0 0
    %1282 = vmatpush1.bf16.xpose.msra.mxu0 0
    %1283 = vmatprep.subr.bf16.mxu0 0
    %1284 = vmatpush1.bf16.xpose.msra.mxu0 0
    %1285 = vmatprep.subr.bf16.mxu0 0
    %1286 = vmatpush1.bf16.xpose.msra.mxu0 0
    %1287 = vmatprep.subr.bf16.mxu0 0
    %1288 = vmatpush1.bf16.xpose.msra.mxu0 0
    %1289 = vmatprep.subr.bf16.mxu0 0
    %1290 = vmatpush1.bf16.xpose.msra.mxu0 0
    %1291 = vmatprep.mubr.bf16.mxu0 0
    %1292 = vmatmul.mubr.bf16.gmra.mrb[0].mxu0 %v1258
    %v1293 = vpop.f32.mrb[0].mxu0
    %v1294 = vadd.f32 %v111, %v1293
    %v1295 = vpop.f32.mrb[0].mxu0
    %v1296 = vpop.f32.mrb[0].mxu0
    %v1297 = vadd.f32 %v112, %v1296
    %v1298 = vpop.f32.mrb[0].mxu0
    %1299 = vdwg.mxu0
    %v1300 = vsel %vm354, %v1294, -inf
    %1301 = vmax.xlane.f32.xlu0 %v1300
    %v1302 = vpop.xlane.xlu0 %1301
    %v1303 = vsel %vm354, %v1297, -inf
    %1304 = vmax.xlane.f32.xlu0 %v1303
    %v1305 = vpop.xlane.xlu0 %1304
    %v1306 = vsub.f32 %v1294, %v1302
    %v1307 = vsub.f32 %v1297, %v1305
    %v1308 = vmul.f32 %v1306, 1.442695
    %v1309 = vpow.pop %v1308
    %v1310 = vmul.f32 %v1307, 1.442695
    %v1311 = vpow.pop %v1310
    %v1312 = vsel %vm354, %v1309, 0.0
    %1313 = vadd.xlane.f32.xlu0 %v1312
    %v1314 = vpop.xlane.xlu0 %1313
    %v1315 = vsel %vm354, %v1311, 0.0
    %1316 = vadd.xlane.f32.xlu0 %v1315
    %v1317 = vpop.xlane.xlu0 %1316
    %v1318 = vrcp.pop %v1314
    %v1319 = vrcp.pop %v1317
    %v1320 = vmul.f32 %v1309, %v1318
    %v1321 = vmul.f32 %v1311, %v1319
    %v1322 = vpack.c.bf16 %v1321, %v1320
    %v1323 = vmul.f32 %v1249, %v309
    %v1324 = vmul.f32 %v1252, %v309
    %v1325 = vpack.c.bf16 %v1324, %v1323
    %v1326 = vmul.f32 %v1125, %v385
    %v1327 = vmul.f32 %v1128, %v385
    %v1328 = vpack.c.bf16 %v1327, %v1326
    %1329 = vmatprep.subr.bf16.mxu0 0
    %1330 = vmatpush1.bf16.xpose.msra.mxu0 %v1255
    %1331 = vmatprep.subr.bf16.mxu0 0
    %1332 = vmatpush1.bf16.xpose.msra.mxu0 0
    %1333 = vmatprep.subr.bf16.mxu0 0
    %1334 = vmatpush1.bf16.xpose.msra.mxu0 0
    %1335 = vmatprep.subr.bf16.mxu0 0
    %1336 = vmatpush1.bf16.xpose.msra.mxu0 0
    %1337 = vmatprep.subr.bf16.mxu0 0
    %1338 = vmatpush1.bf16.xpose.msra.mxu0 0
    %1339 = vmatprep.subr.bf16.mxu0 0
    %1340 = vmatpush1.bf16.xpose.msra.mxu0 0
    %1341 = vmatprep.subr.bf16.mxu0 0
    %1342 = vmatpush1.bf16.xpose.msra.mxu0 0
    %1343 = vmatprep.subr.bf16.mxu0 0
    %1344 = vmatpush1.bf16.xpose.msra.mxu0 0
    %1345 = vmatprep.subr.bf16.mxu0 0
    %1346 = vmatpush1.bf16.xpose.msra.mxu0 0
    %1347 = vmatprep.subr.bf16.mxu0 0
    %1348 = vmatpush1.bf16.xpose.msra.mxu0 0
    %1349 = vmatprep.subr.bf16.mxu0 0
    %1350 = vmatpush1.bf16.xpose.msra.mxu0 0
    %1351 = vmatprep.subr.bf16.mxu0 0
    %1352 = vmatpush1.bf16.xpose.msra.mxu0 0
    %1353 = vmatprep.subr.bf16.mxu0 0
    %1354 = vmatpush1.bf16.xpose.msra.mxu0 0
    %1355 = vmatprep.subr.bf16.mxu0 0
    %1356 = vmatpush1.bf16.xpose.msra.mxu0 0
    %1357 = vmatprep.subr.bf16.mxu0 0
    %1358 = vmatpush1.bf16.xpose.msra.mxu0 0
    %1359 = vmatprep.subr.bf16.mxu0 0
    %1360 = vmatpush1.bf16.xpose.msra.mxu0 0
    %1361 = vmatprep.mubr.bf16.mxu0 0
    %1362 = vmatmul.mubr.bf16.gmra.mrb[0].mxu0 %v1328
    %v1363 = vpop.f32.mrb[0].mxu0
    %v1364 = vadd.f32 %v111, %v1363
    %v1365 = vpop.f32.mrb[0].mxu0
    %v1366 = vpop.f32.mrb[0].mxu0
    %v1367 = vadd.f32 %v112, %v1366
    %v1368 = vpop.f32.mrb[0].mxu0
    %1369 = vdwg.mxu0
    %v1370 = vsel %vm354, %v1364, -inf
    %1371 = vmax.xlane.f32.xlu0 %v1370
    %v1372 = vpop.xlane.xlu0 %1371
    %v1373 = vsel %vm354, %v1367, -inf
    %1374 = vmax.xlane.f32.xlu0 %v1373
    %v1375 = vpop.xlane.xlu0 %1374
    %v1376 = vsub.f32 %v1364, %v1372
    %v1377 = vsub.f32 %v1367, %v1375
    %v1378 = vmul.f32 %v1376, 1.442695
    %v1379 = vpow.pop %v1378
    %v1380 = vmul.f32 %v1377, 1.442695
    %v1381 = vpow.pop %v1380
    %v1382 = vsel %vm354, %v1379, 0.0
    %1383 = vadd.xlane.f32.xlu0 %v1382
    %v1384 = vpop.xlane.xlu0 %1383
    %v1385 = vsel %vm354, %v1381, 0.0
    %1386 = vadd.xlane.f32.xlu0 %v1385
    %v1387 = vpop.xlane.xlu0 %1386
    %v1388 = vrcp.pop %v1384
    %v1389 = vrcp.pop %v1387
    %v1390 = vmul.f32 %v1379, %v1388
    %v1391 = vmul.f32 %v1381, %v1389
    %v1392 = vpack.c.bf16 %v1391, %v1390
    %v1393 = vmul.f32 %v1249, %v385
    %v1394 = vmul.f32 %v1252, %v385
    %v1395 = vpack.c.bf16 %v1394, %v1393
    %v1397 = vsel %vm354, %v1392, 0
    %1399 = vmatprep.subr.bf16.mxu0 0
    %1400 = vmatpush1.bf16.msra.mxu0 %v1395
    %1401 = vmatprep.subr.bf16.mxu0 0
    %1402 = vmatpush1.bf16.msra.mxu0 0
    %1403 = vmatprep.subr.bf16.mxu0 0
    %1404 = vmatpush1.bf16.msra.mxu0 0
    %1405 = vmatprep.subr.bf16.mxu0 0
    %1406 = vmatpush1.bf16.msra.mxu0 0
    %1407 = vmatprep.subr.bf16.mxu0 0
    %1408 = vmatpush1.bf16.msra.mxu0 0
    %1409 = vmatprep.subr.bf16.mxu0 0
    %1410 = vmatpush1.bf16.msra.mxu0 0
    %1411 = vmatprep.subr.bf16.mxu0 0
    %1412 = vmatpush1.bf16.msra.mxu0 0
    %1413 = vmatprep.subr.bf16.mxu0 0
    %1414 = vmatpush1.bf16.msra.mxu0 0
    %1415 = vmatprep.subr.bf16.mxu0 0
    %1416 = vmatpush1.bf16.msra.mxu0 0
    %1417 = vmatprep.subr.bf16.mxu0 0
    %1418 = vmatpush1.bf16.msra.mxu0 0
    %1419 = vmatprep.subr.bf16.mxu0 0
    %1420 = vmatpush1.bf16.msra.mxu0 0
    %1421 = vmatprep.subr.bf16.mxu0 0
    %1422 = vmatpush1.bf16.msra.mxu0 0
    %1423 = vmatprep.subr.bf16.mxu0 0
    %1424 = vmatpush1.bf16.msra.mxu0 0
    %1425 = vmatprep.subr.bf16.mxu0 0
    %1426 = vmatpush1.bf16.msra.mxu0 0
    %1427 = vmatprep.subr.bf16.mxu0 0
    %1428 = vmatpush1.bf16.msra.mxu0 0
    %1429 = vmatprep.subr.bf16.mxu0 0
    %1430 = vmatpush1.bf16.msra.mxu0 0
    %1431 = vmatprep.mubr.bf16.mxu0 0
    %1432 = vmatmul.mubr.bf16.gmra.mrb[0].mxu0 %v1397
    %v1433 = vpop.f32.mrb[0].mxu0
    %v1434 = vadd.f32 0.0, %v1433
    %v1435 = vpop.f32.mrb[0].mxu0
    %v1436 = vpop.f32.mrb[0].mxu0
    %v1437 = vadd.f32 0.0, %v1436
    %v1438 = vpop.f32.mrb[0].mxu0
    %1439 = vdwg.mxu0
    %v1441 = vsel %vm354, %v1322, 0
    %1443 = vmatprep.subr.bf16.mxu0 0
    %1444 = vmatpush1.bf16.msra.mxu0 %v1325
    %1445 = vmatprep.subr.bf16.mxu0 0
    %1446 = vmatpush1.bf16.msra.mxu0 0
    %1447 = vmatprep.subr.bf16.mxu0 0
    %1448 = vmatpush1.bf16.msra.mxu0 0
    %1449 = vmatprep.subr.bf16.mxu0 0
    %1450 = vmatpush1.bf16.msra.mxu0 0
    %1451 = vmatprep.subr.bf16.mxu0 0
    %1452 = vmatpush1.bf16.msra.mxu0 0
    %1453 = vmatprep.subr.bf16.mxu0 0
    %1454 = vmatpush1.bf16.msra.mxu0 0
    %1455 = vmatprep.subr.bf16.mxu0 0
    %1456 = vmatpush1.bf16.msra.mxu0 0
    %1457 = vmatprep.subr.bf16.mxu0 0
    %1458 = vmatpush1.bf16.msra.mxu0 0
    %1459 = vmatprep.subr.bf16.mxu0 0
    %1460 = vmatpush1.bf16.msra.mxu0 0
    %1461 = vmatprep.subr.bf16.mxu0 0
    %1462 = vmatpush1.bf16.msra.mxu0 0
    %1463 = vmatprep.subr.bf16.mxu0 0
    %1464 = vmatpush1.bf16.msra.mxu0 0
    %1465 = vmatprep.subr.bf16.mxu0 0
    %1466 = vmatpush1.bf16.msra.mxu0 0
    %1467 = vmatprep.subr.bf16.mxu0 0
    %1468 = vmatpush1.bf16.msra.mxu0 0
    %1469 = vmatprep.subr.bf16.mxu0 0
    %1470 = vmatpush1.bf16.msra.mxu0 0
    %1471 = vmatprep.subr.bf16.mxu0 0
    %1472 = vmatpush1.bf16.msra.mxu0 0
    %1473 = vmatprep.subr.bf16.mxu0 0
    %1474 = vmatpush1.bf16.msra.mxu0 0
    %1475 = vmatprep.mubr.bf16.mxu0 0
    %1476 = vmatmul.mubr.bf16.gmra.mrb[0].mxu0 %v1441
    %v1477 = vpop.f32.mrb[0].mxu0
    %v1478 = vadd.f32 %v1434, %v1477
    %v1479 = vpop.f32.mrb[0].mxu0
    %v1480 = vpop.f32.mrb[0].mxu0
    %v1481 = vadd.f32 %v1437, %v1480
    %v1482 = vpop.f32.mrb[0].mxu0
    %1483 = vdwg.mxu0
    %v1484 = vmul.f32 %v1125, %v548
    %v1485 = vmul.f32 %v1128, %v548
    %v1486 = vpack.c.bf16 %v1485, %v1484
    %1487 = vmatprep.subr.bf16.mxu0 0
    %1488 = vmatpush1.bf16.xpose.msra.mxu0 %v1255
    %1489 = vmatprep.subr.bf16.mxu0 0
    %1490 = vmatpush1.bf16.xpose.msra.mxu0 0
    %1491 = vmatprep.subr.bf16.mxu0 0
    %1492 = vmatpush1.bf16.xpose.msra.mxu0 0
    %1493 = vmatprep.subr.bf16.mxu0 0
    %1494 = vmatpush1.bf16.xpose.msra.mxu0 0
    %1495 = vmatprep.subr.bf16.mxu0 0
    %1496 = vmatpush1.bf16.xpose.msra.mxu0 0
    %1497 = vmatprep.subr.bf16.mxu0 0
    %1498 = vmatpush1.bf16.xpose.msra.mxu0 0
    %1499 = vmatprep.subr.bf16.mxu0 0
    %1500 = vmatpush1.bf16.xpose.msra.mxu0 0
    %1501 = vmatprep.subr.bf16.mxu0 0
    %1502 = vmatpush1.bf16.xpose.msra.mxu0 0
    %1503 = vmatprep.subr.bf16.mxu0 0
    %1504 = vmatpush1.bf16.xpose.msra.mxu0 0
    %1505 = vmatprep.subr.bf16.mxu0 0
    %1506 = vmatpush1.bf16.xpose.msra.mxu0 0
    %1507 = vmatprep.subr.bf16.mxu0 0
    %1508 = vmatpush1.bf16.xpose.msra.mxu0 0
    %1509 = vmatprep.subr.bf16.mxu0 0
    %1510 = vmatpush1.bf16.xpose.msra.mxu0 0
    %1511 = vmatprep.subr.bf16.mxu0 0
    %1512 = vmatpush1.bf16.xpose.msra.mxu0 0
    %1513 = vmatprep.subr.bf16.mxu0 0
    %1514 = vmatpush1.bf16.xpose.msra.mxu0 0
    %1515 = vmatprep.subr.bf16.mxu0 0
    %1516 = vmatpush1.bf16.xpose.msra.mxu0 0
    %1517 = vmatprep.subr.bf16.mxu0 0
    %1518 = vmatpush1.bf16.xpose.msra.mxu0 0
    %1519 = vmatprep.mubr.bf16.mxu0 0
    %1520 = vmatmul.mubr.bf16.gmra.mrb[0].mxu0 %v1486
    %v1521 = vpop.f32.mrb[0].mxu0
    %v1522 = vadd.f32 %v111, %v1521
    %v1523 = vpop.f32.mrb[0].mxu0
    %v1524 = vpop.f32.mrb[0].mxu0
    %v1525 = vadd.f32 %v112, %v1524
    %v1526 = vpop.f32.mrb[0].mxu0
    %1527 = vdwg.mxu0
    %v1528 = vsel %vm354, %v1522, -inf
    %1529 = vmax.xlane.f32.xlu0 %v1528
    %v1530 = vpop.xlane.xlu0 %1529
    %v1531 = vsel %vm354, %v1525, -inf
    %1532 = vmax.xlane.f32.xlu0 %v1531
    %v1533 = vpop.xlane.xlu0 %1532
    %v1534 = vsub.f32 %v1522, %v1530
    %v1535 = vsub.f32 %v1525, %v1533
    %v1536 = vmul.f32 %v1534, 1.442695
    %v1537 = vpow.pop %v1536
    %v1538 = vmul.f32 %v1535, 1.442695
    %v1539 = vpow.pop %v1538
    %v1540 = vsel %vm354, %v1537, 0.0
    %1541 = vadd.xlane.f32.xlu0 %v1540
    %v1542 = vpop.xlane.xlu0 %1541
    %v1543 = vsel %vm354, %v1539, 0.0
    %1544 = vadd.xlane.f32.xlu0 %v1543
    %v1545 = vpop.xlane.xlu0 %1544
    %v1546 = vrcp.pop %v1542
    %v1547 = vrcp.pop %v1545
    %v1548 = vmul.f32 %v1537, %v1546
    %v1549 = vmul.f32 %v1539, %v1547
    %v1550 = vpack.c.bf16 %v1549, %v1548
    %v1551 = vmul.f32 %v1249, %v548
    %v1552 = vmul.f32 %v1252, %v548
    %v1553 = vpack.c.bf16 %v1552, %v1551
    %v1555 = vsel %vm354, %v1550, 0
    %1557 = vmatprep.subr.bf16.mxu0 0
    %1558 = vmatpush1.bf16.msra.mxu0 %v1553
    %1559 = vmatprep.subr.bf16.mxu0 0
    %1560 = vmatpush1.bf16.msra.mxu0 0
    %1561 = vmatprep.subr.bf16.mxu0 0
    %1562 = vmatpush1.bf16.msra.mxu0 0
    %1563 = vmatprep.subr.bf16.mxu0 0
    %1564 = vmatpush1.bf16.msra.mxu0 0
    %1565 = vmatprep.subr.bf16.mxu0 0
    %1566 = vmatpush1.bf16.msra.mxu0 0
    %1567 = vmatprep.subr.bf16.mxu0 0
    %1568 = vmatpush1.bf16.msra.mxu0 0
    %1569 = vmatprep.subr.bf16.mxu0 0
    %1570 = vmatpush1.bf16.msra.mxu0 0
    %1571 = vmatprep.subr.bf16.mxu0 0
    %1572 = vmatpush1.bf16.msra.mxu0 0
    %1573 = vmatprep.subr.bf16.mxu0 0
    %1574 = vmatpush1.bf16.msra.mxu0 0
    %1575 = vmatprep.subr.bf16.mxu0 0
    %1576 = vmatpush1.bf16.msra.mxu0 0
    %1577 = vmatprep.subr.bf16.mxu0 0
    %1578 = vmatpush1.bf16.msra.mxu0 0
    %1579 = vmatprep.subr.bf16.mxu0 0
    %1580 = vmatpush1.bf16.msra.mxu0 0
    %1581 = vmatprep.subr.bf16.mxu0 0
    %1582 = vmatpush1.bf16.msra.mxu0 0
    %1583 = vmatprep.subr.bf16.mxu0 0
    %1584 = vmatpush1.bf16.msra.mxu0 0
    %1585 = vmatprep.subr.bf16.mxu0 0
    %1586 = vmatpush1.bf16.msra.mxu0 0
    %1587 = vmatprep.subr.bf16.mxu0 0
    %1588 = vmatpush1.bf16.msra.mxu0 0
    %1589 = vmatprep.mubr.bf16.mxu0 0
    %1590 = vmatmul.mubr.bf16.gmra.mrb[0].mxu0 %v1555
    %v1591 = vpop.f32.mrb[0].mxu0
    %v1592 = vadd.f32 0.0, %v1591
    %v1593 = vpop.f32.mrb[0].mxu0
    %v1594 = vpop.f32.mrb[0].mxu0
    %v1595 = vadd.f32 0.0, %v1594
    %v1596 = vpop.f32.mrb[0].mxu0
    %1597 = vdwg.mxu0
    %v1598 = vadd.f32 %v1478, %v1592
    %v1599 = vadd.f32 %v1481, %v1595
    %v1600 = vmul.f32 %v1125, %v669
    %v1601 = vmul.f32 %v1128, %v669
    %v1602 = vpack.c.bf16 %v1601, %v1600
    %1603 = vmatprep.subr.bf16.mxu0 0
    %1604 = vmatpush1.bf16.xpose.msra.mxu0 %v1255
    %1605 = vmatprep.subr.bf16.mxu0 0
    %1606 = vmatpush1.bf16.xpose.msra.mxu0 0
    %1607 = vmatprep.subr.bf16.mxu0 0
    %1608 = vmatpush1.bf16.xpose.msra.mxu0 0
    %1609 = vmatprep.subr.bf16.mxu0 0
    %1610 = vmatpush1.bf16.xpose.msra.mxu0 0
    %1611 = vmatprep.subr.bf16.mxu0 0
    %1612 = vmatpush1.bf16.xpose.msra.mxu0 0
    %1613 = vmatprep.subr.bf16.mxu0 0
    %1614 = vmatpush1.bf16.xpose.msra.mxu0 0
    %1615 = vmatprep.subr.bf16.mxu0 0
    %1616 = vmatpush1.bf16.xpose.msra.mxu0 0
    %1617 = vmatprep.subr.bf16.mxu0 0
    %1618 = vmatpush1.bf16.xpose.msra.mxu0 0
    %1619 = vmatprep.subr.bf16.mxu0 0
    %1620 = vmatpush1.bf16.xpose.msra.mxu0 0
    %1621 = vmatprep.subr.bf16.mxu0 0
    %1622 = vmatpush1.bf16.xpose.msra.mxu0 0
    %1623 = vmatprep.subr.bf16.mxu0 0
    %1624 = vmatpush1.bf16.xpose.msra.mxu0 0
    %1625 = vmatprep.subr.bf16.mxu0 0
    %1626 = vmatpush1.bf16.xpose.msra.mxu0 0
    %1627 = vmatprep.subr.bf16.mxu0 0
    %1628 = vmatpush1.bf16.xpose.msra.mxu0 0
    %1629 = vmatprep.subr.bf16.mxu0 0
    %1630 = vmatpush1.bf16.xpose.msra.mxu0 0
    %1631 = vmatprep.subr.bf16.mxu0 0
    %1632 = vmatpush1.bf16.xpose.msra.mxu0 0
    %1633 = vmatprep.subr.bf16.mxu0 0
    %1634 = vmatpush1.bf16.xpose.msra.mxu0 0
    %1635 = vmatprep.mubr.bf16.mxu0 0
    %1636 = vmatmul.mubr.bf16.gmra.mrb[0].mxu0 %v1602
    %v1637 = vpop.f32.mrb[0].mxu0
    %v1638 = vadd.f32 %v111, %v1637
    %v1639 = vpop.f32.mrb[0].mxu0
    %v1640 = vpop.f32.mrb[0].mxu0
    %v1641 = vadd.f32 %v112, %v1640
    %v1642 = vpop.f32.mrb[0].mxu0
    %1643 = vdwg.mxu0
    %v1644 = vsel %vm354, %v1638, -inf
    %1645 = vmax.xlane.f32.xlu0 %v1644
    %v1646 = vpop.xlane.xlu0 %1645
    %v1647 = vsel %vm354, %v1641, -inf
    %1648 = vmax.xlane.f32.xlu0 %v1647
    %v1649 = vpop.xlane.xlu0 %1648
    %v1650 = vsub.f32 %v1638, %v1646
    %v1651 = vsub.f32 %v1641, %v1649
    %v1652 = vmul.f32 %v1650, 1.442695
    %v1653 = vpow.pop %v1652
    %v1654 = vmul.f32 %v1651, 1.442695
    %v1655 = vpow.pop %v1654
    %v1656 = vsel %vm354, %v1653, 0.0
    %1657 = vadd.xlane.f32.xlu0 %v1656
    %v1658 = vpop.xlane.xlu0 %1657
    %v1659 = vsel %vm354, %v1655, 0.0
    %1660 = vadd.xlane.f32.xlu0 %v1659
    %v1661 = vpop.xlane.xlu0 %1660
    %v1662 = vrcp.pop %v1658
    %v1663 = vrcp.pop %v1661
    %v1664 = vmul.f32 %v1653, %v1662
    %v1665 = vmul.f32 %v1655, %v1663
    %v1666 = vpack.c.bf16 %v1665, %v1664
    %v1667 = vmul.f32 %v1249, %v669
    %v1668 = vmul.f32 %v1252, %v669
    %v1669 = vpack.c.bf16 %v1668, %v1667
    %v1671 = vsel %vm354, %v1666, 0
    %1673 = vmatprep.subr.bf16.mxu0 0
    %1674 = vmatpush1.bf16.msra.mxu0 %v1669
    %1675 = vmatprep.subr.bf16.mxu0 0
    %1676 = vmatpush1.bf16.msra.mxu0 0
    %1677 = vmatprep.subr.bf16.mxu0 0
    %1678 = vmatpush1.bf16.msra.mxu0 0
    %1679 = vmatprep.subr.bf16.mxu0 0
    %1680 = vmatpush1.bf16.msra.mxu0 0
    %1681 = vmatprep.subr.bf16.mxu0 0
    %1682 = vmatpush1.bf16.msra.mxu0 0
    %1683 = vmatprep.subr.bf16.mxu0 0
    %1684 = vmatpush1.bf16.msra.mxu0 0
    %1685 = vmatprep.subr.bf16.mxu0 0
    %1686 = vmatpush1.bf16.msra.mxu0 0
    %1687 = vmatprep.subr.bf16.mxu0 0
    %1688 = vmatpush1.bf16.msra.mxu0 0
    %1689 = vmatprep.subr.bf16.mxu0 0
    %1690 = vmatpush1.bf16.msra.mxu0 0
    %1691 = vmatprep.subr.bf16.mxu0 0
    %1692 = vmatpush1.bf16.msra.mxu0 0
    %1693 = vmatprep.subr.bf16.mxu0 0
    %1694 = vmatpush1.bf16.msra.mxu0 0
    %1695 = vmatprep.subr.bf16.mxu0 0
    %1696 = vmatpush1.bf16.msra.mxu0 0
    %1697 = vmatprep.subr.bf16.mxu0 0
    %1698 = vmatpush1.bf16.msra.mxu0 0
    %1699 = vmatprep.subr.bf16.mxu0 0
    %1700 = vmatpush1.bf16.msra.mxu0 0
    %1701 = vmatprep.subr.bf16.mxu0 0
    %1702 = vmatpush1.bf16.msra.mxu0 0
    %1703 = vmatprep.subr.bf16.mxu0 0
    %1704 = vmatpush1.bf16.msra.mxu0 0
    %1705 = vmatprep.mubr.bf16.mxu0 0
    %1706 = vmatmul.mubr.bf16.gmra.mrb[0].mxu0 %v1671
    %v1707 = vpop.f32.mrb[0].mxu0
    %v1708 = vadd.f32 0.0, %v1707
    %v1709 = vpop.f32.mrb[0].mxu0
    %v1710 = vpop.f32.mrb[0].mxu0
    %v1711 = vadd.f32 0.0, %v1710
    %v1712 = vpop.f32.mrb[0].mxu0
    %1713 = vdwg.mxu0
    %v1714 = vadd.f32 %v1598, %v1708
    %v1715 = vadd.f32 %v1599, %v1711
    %v1716 = vpack.c.bf16 %v1715, %v1714
    %v1717 = vld [vmem:[#allocation2 + $0xa0] sm:$0xf]
    %v1718 = vld [vmem:[#allocation2 + $0xa4] sm:$0xf]
    %v1719 = vld [vmem:[#allocation2 + $0xa8] sm:$0xf]
    %v1720 = vld [vmem:[#allocation2 + $0xac] sm:$0xf]
    %v1721 = vld [vmem:[#allocation5 + $0x4b] sm:$0x1]
    %v1722 = vlaneseq
    %v1723 = vshrl.u32 %v1722, 7
    %v1724 = vsub.s32 0, %v1723
    %v1725 = vrot.slane %v1721, %v1724
    %v1730 = vunpack.c.l.b16 %v1717
    %v1731 = vunpack.c.l.b16 %v1718
    %v1732 = vunpack.c.l.b16 %v1719
    %v1733 = vunpack.c.l.b16 %v1720
    %v1734 = vpack.c.b16 %v1731, %v1730
    %v1735 = vpack.c.b16 %v1733, %v1732
    %1738 = vmatprep.subr.bf16.mxu0 0
    %1739 = vmatpush1.bf16.xpose.msra.mxu0 %v1734
    %1740 = vmatprep.subr.bf16.mxu0 0
    %1741 = vmatpush1.bf16.xpose.msra.mxu0 %v1735
    %1742 = vmatprep.subr.bf16.mxu0 0
    %1743 = vmatpush1.bf16.xpose.msra.mxu0 0
    %1744 = vmatprep.subr.bf16.mxu0 0
    %1745 = vmatpush1.bf16.xpose.msra.mxu0 0
    %1746 = vmatprep.subr.bf16.mxu0 0
    %1747 = vmatpush1.bf16.xpose.msra.mxu0 0
    %1748 = vmatprep.subr.bf16.mxu0 0
    %1749 = vmatpush1.bf16.xpose.msra.mxu0 0
    %1750 = vmatprep.subr.bf16.mxu0 0
    %1751 = vmatpush1.bf16.xpose.msra.mxu0 0
    %1752 = vmatprep.subr.bf16.mxu0 0
    %1753 = vmatpush1.bf16.xpose.msra.mxu0 0
    %1754 = vmatprep.subr.bf16.mxu0 0
    %1755 = vmatpush1.bf16.xpose.msra.mxu0 0
    %1756 = vmatprep.subr.bf16.mxu0 0
    %1757 = vmatpush1.bf16.xpose.msra.mxu0 0
    %1758 = vmatprep.subr.bf16.mxu0 0
    %1759 = vmatpush1.bf16.xpose.msra.mxu0 0
    %1760 = vmatprep.subr.bf16.mxu0 0
    %1761 = vmatpush1.bf16.xpose.msra.mxu0 0
    %1762 = vmatprep.subr.bf16.mxu0 0
    %1763 = vmatpush1.bf16.xpose.msra.mxu0 0
    %1764 = vmatprep.subr.bf16.mxu0 0
    %1765 = vmatpush1.bf16.xpose.msra.mxu0 0
    %1766 = vmatprep.subr.bf16.mxu0 0
    %1767 = vmatpush1.bf16.xpose.msra.mxu0 0
    %1768 = vmatprep.subr.bf16.mxu0 0
    %1769 = vmatpush1.bf16.xpose.msra.mxu0 0
    %1770 = vmatprep.mubr.bf16.mxu0 0
    %1771 = vmatmul.mubr.bf16.gmra.mrb[0].mxu0 %v1716
    %v1772 = vpop.f32.mrb[0].mxu0
    %v1773 = vadd.f32 %v1725, %v1772
    %v1774 = vpop.f32.mrb[0].mxu0
    %v1775 = vpop.f32.mrb[0].mxu0
    %v1776 = vadd.f32 %v1725, %v1775
    %v1777 = vpop.f32.mrb[0].mxu0
    %1778 = vdwg.mxu0
    %v1779 = vadd.f32 %v1773, %v1063
    %v1780 = vadd.f32 %v1776, %v1064
    %v1781 = vld [vmem:[#allocation5 + $0x4c] sm:$0x1]
    %v1782 = vld [vmem:[#allocation5 + $0x4d] sm:$0x1]
    %v1783 = vsel %vm135, %v1779, 0.0
    %1784 = vadd.xlane.f32.xlu0 %v1783
    %v1785 = vpop.xlane.xlu0 %1784
    %v1786 = vsel %vm135, %v1780, 0.0
    %1787 = vadd.xlane.f32.xlu0 %v1786
    %v1788 = vpop.xlane.xlu0 %1787
    %v1789 = vmul.f32 %v1785, %v859
    %v1790 = vmul.f32 %v1788, %v859
    %v1791 = vsub.f32 %v1779, %v1789
    %v1792 = vsub.f32 %v1780, %v1790
    %v1793 = vmul.f32 %v1791, %v1791
    %v1794 = vmul.f32 %v1792, %v1792
    %v1795 = vsel %vm135, %v1793, 0.0
    %1796 = vadd.xlane.f32.xlu0 %v1795
    %v1797 = vpop.xlane.xlu0 %1796
    %v1798 = vsel %vm135, %v1794, 0.0
    %1799 = vadd.xlane.f32.xlu0 %v1798
    %v1800 = vpop.xlane.xlu0 %1799
    %v1801 = vmul.f32 %v1797, %v859
    %v1802 = vmul.f32 %v1800, %v859
    %v1803 = vadd.f32 %v1801, 1e-06
    %v1804 = vadd.f32 %v1802, 1e-06
    %v1805 = vrsqrt.pop %v1803
    %v1806 = vrsqrt.pop %v1804
    %v1807 = vmul.f32 %v1791, %v1805
    %v1808 = vmul.f32 %v1792, %v1806
    %v1809 = vlaneseq
    %v1810 = vshrl.u32 %v1809, 7
    %v1811 = vsub.s32 0, %v1810
    %v1812 = vrot.slane %v1781, %v1811
    %v1813 = vmul.f32 %v1807, %v1812
    %v1814 = vmul.f32 %v1808, %v1812
    %v1815 = vlaneseq
    %v1816 = vshrl.u32 %v1815, 7
    %v1817 = vsub.s32 0, %v1816
    %v1818 = vrot.slane %v1782, %v1817
    %v1819 = vadd.f32 %v1813, %v1818
    %v1820 = vadd.f32 %v1814, %v1818
    %v1821 = vpack.c.bf16 %v1820, %v1819
    %v1822 = vld [vmem:[#allocation2 + $0xb0] sm:$0xf]
    %v1823 = vld [vmem:[#allocation2 + $0xb4] sm:$0xf]
    %v1824 = vld [vmem:[#allocation2 + $0xb8] sm:$0xf]
    %v1825 = vld [vmem:[#allocation2 + $0xbc] sm:$0xf]
    %v1826 = vld [vmem:[#allocation5 + $0x4e] sm:$0x1]
    %v1827 = vlaneseq
    %v1828 = vshrl.u32 %v1827, 7
    %v1829 = vsub.s32 0, %v1828
    %v1830 = vrot.slane %v1826, %v1829
    %v1835 = vunpack.c.l.b16 %v1822
    %v1836 = vunpack.c.l.b16 %v1823
    %v1837 = vunpack.c.l.b16 %v1824
    %v1838 = vunpack.c.l.b16 %v1825
    %v1839 = vpack.c.b16 %v1836, %v1835
    %v1840 = vpack.c.b16 %v1838, %v1837
    %v1844 = vsel %vm135, %v1821, 0
    %1846 = vmatprep.subr.bf16.mxu0 0
    %1847 = vmatpush1.bf16.msra.mxu0 %v1839
    %1848 = vmatprep.subr.bf16.mxu0 0
    %1849 = vmatpush1.bf16.msra.mxu0 %v1840
    %1850 = vmatprep.subr.bf16.mxu0 0
    %1851 = vmatpush1.bf16.msra.mxu0 0
    %1852 = vmatprep.subr.bf16.mxu0 0
    %1853 = vmatpush1.bf16.msra.mxu0 0
    %1854 = vmatprep.subr.bf16.mxu0 0
    %1855 = vmatpush1.bf16.msra.mxu0 0
    %1856 = vmatprep.subr.bf16.mxu0 0
    %1857 = vmatpush1.bf16.msra.mxu0 0
    %1858 = vmatprep.subr.bf16.mxu0 0
    %1859 = vmatpush1.bf16.msra.mxu0 0
    %1860 = vmatprep.subr.bf16.mxu0 0
    %1861 = vmatpush1.bf16.msra.mxu0 0
    %1862 = vmatprep.subr.bf16.mxu0 0
    %1863 = vmatpush1.bf16.msra.mxu0 0
    %1864 = vmatprep.subr.bf16.mxu0 0
    %1865 = vmatpush1.bf16.msra.mxu0 0
    %1866 = vmatprep.subr.bf16.mxu0 0
    %1867 = vmatpush1.bf16.msra.mxu0 0
    %1868 = vmatprep.subr.bf16.mxu0 0
    %1869 = vmatpush1.bf16.msra.mxu0 0
    %1870 = vmatprep.subr.bf16.mxu0 0
    %1871 = vmatpush1.bf16.msra.mxu0 0
    %1872 = vmatprep.subr.bf16.mxu0 0
    %1873 = vmatpush1.bf16.msra.mxu0 0
    %1874 = vmatprep.subr.bf16.mxu0 0
    %1875 = vmatpush1.bf16.msra.mxu0 0
    %1876 = vmatprep.subr.bf16.mxu0 0
    %1877 = vmatpush1.bf16.msra.mxu0 0
    %1878 = vmatprep.mubr.bf16.mxu0 0
    %1879 = vmatmul.mubr.bf16.gmra.mrb[0].mxu0 %v1844
    %v1880 = vpop.f32.mrb[0].mxu0
    %v1881 = vadd.f32 %v1830, %v1880
    %v1882 = vpop.f32.mrb[0].mxu0
    %v1883 = vpop.f32.mrb[0].mxu0
    %v1884 = vadd.f32 %v1830, %v1883
    %v1885 = vpop.f32.mrb[0].mxu0
    %1886 = vdwg.mxu0
    %v1887 = vmax.f32 %v1881, 0.0
    %v1888 = vmax.f32 %v1884, 0.0
    %v1889 = vpack.c.bf16 %v1888, %v1887
    %v1890 = vld [vmem:[#allocation2 + $0xc0] sm:$0xf]
    %v1891 = vld [vmem:[#allocation2 + $0xc4] sm:$0xf]
    %v1892 = vld [vmem:[#allocation2 + $0xc8] sm:$0xf]
    %v1893 = vld [vmem:[#allocation2 + $0xcc] sm:$0xf]
    %v1894 = vld [vmem:[#allocation5 + $0x4f] sm:$0x1]
    %v1895 = vlaneseq
    %v1896 = vshrl.u32 %v1895, 7
    %v1897 = vsub.s32 0, %v1896
    %v1898 = vrot.slane %v1894, %v1897
    %v1903 = vunpack.c.l.b16 %v1890
    %v1904 = vunpack.c.l.b16 %v1891
    %v1905 = vunpack.c.l.b16 %v1892
    %v1906 = vunpack.c.l.b16 %v1893
    %v1907 = vpack.c.b16 %v1904, %v1903
    %v1908 = vpack.c.b16 %v1906, %v1905
    %1911 = vmatprep.subr.bf16.mxu0 0
    %1912 = vmatpush1.bf16.xpose.msra.mxu0 %v1907
    %1913 = vmatprep.subr.bf16.mxu0 0
    %1914 = vmatpush1.bf16.xpose.msra.mxu0 %v1908
    %1915 = vmatprep.subr.bf16.mxu0 0
    %1916 = vmatpush1.bf16.xpose.msra.mxu0 0
    %1917 = vmatprep.subr.bf16.mxu0 0
    %1918 = vmatpush1.bf16.xpose.msra.mxu0 0
    %1919 = vmatprep.subr.bf16.mxu0 0
    %1920 = vmatpush1.bf16.xpose.msra.mxu0 0
    %1921 = vmatprep.subr.bf16.mxu0 0
    %1922 = vmatpush1.bf16.xpose.msra.mxu0 0
    %1923 = vmatprep.subr.bf16.mxu0 0
    %1924 = vmatpush1.bf16.xpose.msra.mxu0 0
    %1925 = vmatprep.subr.bf16.mxu0 0
    %1926 = vmatpush1.bf16.xpose.msra.mxu0 0
    %1927 = vmatprep.subr.bf16.mxu0 0
    %1928 = vmatpush1.bf16.xpose.msra.mxu0 0
    %1929 = vmatprep.subr.bf16.mxu0 0
    %1930 = vmatpush1.bf16.xpose.msra.mxu0 0
    %1931 = vmatprep.subr.bf16.mxu0 0
    %1932 = vmatpush1.bf16.xpose.msra.mxu0 0
    %1933 = vmatprep.subr.bf16.mxu0 0
    %1934 = vmatpush1.bf16.xpose.msra.mxu0 0
    %1935 = vmatprep.subr.bf16.mxu0 0
    %1936 = vmatpush1.bf16.xpose.msra.mxu0 0
    %1937 = vmatprep.subr.bf16.mxu0 0
    %1938 = vmatpush1.bf16.xpose.msra.mxu0 0
    %1939 = vmatprep.subr.bf16.mxu0 0
    %1940 = vmatpush1.bf16.xpose.msra.mxu0 0
    %1941 = vmatprep.subr.bf16.mxu0 0
    %1942 = vmatpush1.bf16.xpose.msra.mxu0 0
    %1943 = vmatprep.mubr.bf16.mxu0 0
    %1944 = vmatmul.mubr.bf16.gmra.mrb[0].mxu0 %v1889
    %v1945 = vpop.f32.mrb[0].mxu0
    %v1946 = vadd.f32 %v1898, %v1945
    %v1947 = vpop.f32.mrb[0].mxu0
    %v1948 = vpop.f32.mrb[0].mxu0
    %v1949 = vadd.f32 %v1898, %v1948
    %v1950 = vpop.f32.mrb[0].mxu0
    %1951 = vdwg.mxu0
    %v1952 = vadd.f32 %v1946, %v1819
    %v1953 = vadd.f32 %v1949, %v1820
    %v1954 = vld [vmem:[#allocation5 + $0x50] sm:$0x1]
    %v1955 = vld [vmem:[#allocation5 + $0x51] sm:$0x1]
    %v1956 = vsel %vm135, %v1952, 0.0
    %1957 = vadd.xlane.f32.xlu0 %v1956
    %v1958 = vpop.xlane.xlu0 %1957
    %v1959 = vsel %vm135, %v1953, 0.0
    %1960 = vadd.xlane.f32.xlu0 %v1959
    %v1961 = vpop.xlane.xlu0 %1960
    %v1962 = vmul.f32 %v1958, %v859
    %v1963 = vmul.f32 %v1961, %v859
    %v1964 = vsub.f32 %v1952, %v1962
    %v1965 = vsub.f32 %v1953, %v1963
    %v1966 = vmul.f32 %v1964, %v1964
    %v1967 = vmul.f32 %v1965, %v1965
    %v1968 = vsel %vm135, %v1966, 0.0
    %1969 = vadd.xlane.f32.xlu0 %v1968
    %v1970 = vpop.xlane.xlu0 %1969
    %v1971 = vsel %vm135, %v1967, 0.0
    %1972 = vadd.xlane.f32.xlu0 %v1971
    %v1973 = vpop.xlane.xlu0 %1972
    %v1974 = vmul.f32 %v1970, %v859
    %v1975 = vmul.f32 %v1973, %v859
    %v1976 = vadd.f32 %v1974, 1e-06
    %v1977 = vadd.f32 %v1975, 1e-06
    %v1978 = vrsqrt.pop %v1976
    %v1979 = vrsqrt.pop %v1977
    %v1980 = vmul.f32 %v1964, %v1978
    %v1981 = vmul.f32 %v1965, %v1979
    %v1982 = vlaneseq
    %v1983 = vshrl.u32 %v1982, 7
    %v1984 = vsub.s32 0, %v1983
    %v1985 = vrot.slane %v1954, %v1984
    %v1986 = vmul.f32 %v1980, %v1985
    %v1987 = vmul.f32 %v1981, %v1985
    %v1988 = vlaneseq
    %v1989 = vshrl.u32 %v1988, 7
    %v1990 = vsub.s32 0, %v1989
    %v1991 = vrot.slane %v1955, %v1990
    %v1992 = vadd.f32 %v1986, %v1991
    %v1993 = vadd.f32 %v1987, %v1991
    %v1994 = vld [vmem:[#allocation5 + $0x20] sm:$0x3]
    %v1995 = vpack.c.bf16 %v1994, %v1994
    %v1996 = vpack.c.bf16 %v1993, %v1992
    %v1998 = vsel %vm354, %v1995, 0
    %2000 = vmatprep.subr.bf16.mxu0 0
    %2001 = vmatpush1.bf16.msra.mxu0 %v1996
    %2002 = vmatprep.subr.bf16.mxu0 0
    %2003 = vmatpush1.bf16.msra.mxu0 0
    %2004 = vmatprep.subr.bf16.mxu0 0
    %2005 = vmatpush1.bf16.msra.mxu0 0
    %2006 = vmatprep.subr.bf16.mxu0 0
    %2007 = vmatpush1.bf16.msra.mxu0 0
    %2008 = vmatprep.subr.bf16.mxu0 0
    %2009 = vmatpush1.bf16.msra.mxu0 0
    %2010 = vmatprep.subr.bf16.mxu0 0
    %2011 = vmatpush1.bf16.msra.mxu0 0
    %2012 = vmatprep.subr.bf16.mxu0 0
    %2013 = vmatpush1.bf16.msra.mxu0 0
    %2014 = vmatprep.subr.bf16.mxu0 0
    %2015 = vmatpush1.bf16.msra.mxu0 0
    %2016 = vmatprep.subr.bf16.mxu0 0
    %2017 = vmatpush1.bf16.msra.mxu0 0
    %2018 = vmatprep.subr.bf16.mxu0 0
    %2019 = vmatpush1.bf16.msra.mxu0 0
    %2020 = vmatprep.subr.bf16.mxu0 0
    %2021 = vmatpush1.bf16.msra.mxu0 0
    %2022 = vmatprep.subr.bf16.mxu0 0
    %2023 = vmatpush1.bf16.msra.mxu0 0
    %2024 = vmatprep.subr.bf16.mxu0 0
    %2025 = vmatpush1.bf16.msra.mxu0 0
    %2026 = vmatprep.subr.bf16.mxu0 0
    %2027 = vmatpush1.bf16.msra.mxu0 0
    %2028 = vmatprep.subr.bf16.mxu0 0
    %2029 = vmatpush1.bf16.msra.mxu0 0
    %2030 = vmatprep.subr.bf16.mxu0 0
    %2031 = vmatpush1.bf16.msra.mxu0 0
    %2032 = vmatprep.mubr.bf16.mxu0 0
    %2033 = vmatmul.mubr.bf16.gmra.mrb[0].mxu0 %v1998
    %v2034 = vpop.f32.mrb[0].mxu0
    %v2035 = vadd.f32 0.0, %v2034
    %v2036 = vpop.f32.mrb[0].mxu0
    %v2037 = vpop.f32.mrb[0].mxu0
    %v2038 = vpop.f32.mrb[0].mxu0
    %2039 = vdwg.mxu0
    %v2040 = vpack.c.bf16 %v2035, %v2035
    %v2041 = vld [vmem:[#allocation2 + $0xd0] sm:$0xf]
    %v2042 = vld [vmem:[#allocation2 + $0xd4] sm:$0xf]
    %v2043 = vld [vmem:[#allocation2 + $0xd8] sm:$0xf]
    %v2044 = vld [vmem:[#allocation2 + $0xdc] sm:$0xf]
    %v2045 = vld [vmem:[#allocation5 + $0x30] sm:$0x1]
    %v2046 = vlaneseq
    %v2047 = vshrl.u32 %v2046, 7
    %v2048 = vsub.s32 0, %v2047
    %v2049 = vrot.slane %v2045, %v2048
    %v2054 = vunpack.c.l.b16 %v2041
    %v2055 = vunpack.c.l.b16 %v2042
    %v2056 = vunpack.c.l.b16 %v2043
    %v2057 = vunpack.c.l.b16 %v2044
    %v2058 = vpack.c.b16 %v2055, %v2054
    %v2059 = vpack.c.b16 %v2057, %v2056
    %v2063 = vsel %vm135, %v2040, 0
    %2065 = vmatprep.subr.bf16.mxu0 0
    %2066 = vmatpush1.bf16.msra.mxu0 %v2058
    %2067 = vmatprep.subr.bf16.mxu0 0
    %2068 = vmatpush1.bf16.msra.mxu0 %v2059
    %2069 = vmatprep.subr.bf16.mxu0 0
    %2070 = vmatpush1.bf16.msra.mxu0 0
    %2071 = vmatprep.subr.bf16.mxu0 0
    %2072 = vmatpush1.bf16.msra.mxu0 0
    %2073 = vmatprep.subr.bf16.mxu0 0
    %2074 = vmatpush1.bf16.msra.mxu0 0
    %2075 = vmatprep.subr.bf16.mxu0 0
    %2076 = vmatpush1.bf16.msra.mxu0 0
    %2077 = vmatprep.subr.bf16.mxu0 0
    %2078 = vmatpush1.bf16.msra.mxu0 0
    %2079 = vmatprep.subr.bf16.mxu0 0
    %2080 = vmatpush1.bf16.msra.mxu0 0
    %2081 = vmatprep.subr.bf16.mxu0 0
    %2082 = vmatpush1.bf16.msra.mxu0 0
    %2083 = vmatprep.subr.bf16.mxu0 0
    %2084 = vmatpush1.bf16.msra.mxu0 0
    %2085 = vmatprep.subr.bf16.mxu0 0
    %2086 = vmatpush1.bf16.msra.mxu0 0
    %2087 = vmatprep.subr.bf16.mxu0 0
    %2088 = vmatpush1.bf16.msra.mxu0 0
    %2089 = vmatprep.subr.bf16.mxu0 0
    %2090 = vmatpush1.bf16.msra.mxu0 0
    %2091 = vmatprep.subr.bf16.mxu0 0
    %2092 = vmatpush1.bf16.msra.mxu0 0
    %2093 = vmatprep.subr.bf16.mxu0 0
    %2094 = vmatpush1.bf16.msra.mxu0 0
    %2095 = vmatprep.subr.bf16.mxu0 0
    %2096 = vmatpush1.bf16.msra.mxu0 0
    %2097 = vmatprep.mubr.bf16.mxu0 0
    %2098 = vmatmul.mubr.bf16.gmra.mrb[0].mxu0 %v2063
    %v2099 = vpop.f32.mrb[0].mxu0
    %v2100 = vadd.f32 %v2049, %v2099
    %v2101 = vpop.f32.mrb[0].mxu0
    %v2102 = vpop.f32.mrb[0].mxu0
    %v2103 = vpop.f32.mrb[0].mxu0
    %2104 = vdwg.mxu0
    %2105 = vst [vmem:[#allocation7] sm:$0x3] %v2100
    // Predicated region
    $region22: #{transformer_classifier.1} parent=1 // pred_check
      _
    $region23: #{transformer_classifier.1} parent=1 // pred_check_branch
      %2107 = sbr.rel (0) target = $region25
    $region24: #{transformer_classifier.1} parent=1 // pred_region
      %s2109 = ssub.s32 32, 32
      %2110 = vsyncadd [#allocation4], %s2109
      %s2112 = sshll.u32 [#allocation7], 4
      %s2113 = int_to_ptr.vmem [resolvable:$true] %s2112
      %2115 = dma.vmem_to_hbm [thread:$0]  %s2113, 32, %s3, [#allocation4]
    $region25: #{transformer_classifier.1} parent=1 // pred_fallthru
      _
    // Predicated region
    $region26: #{transformer_classifier.1} parent=1 // pred_check
      _
    $region27: #{transformer_classifier.1} parent=1 // pred_check_branch
      %2117 = sbr.rel (0) target = $region29
    $region28: #{transformer_classifier.1} parent=1 // pred_region
      %2118 = dma.done [#allocation4], 32
    $region29: #{transformer_classifier.1} parent=1 // pred_fallthru
      _
    %2119 = vsyncpa [#allocation3], 1
    %2120 = vsyncpa [#allocation6], 1
    %2121 = vsyncpa [#allocation4], 1

</llo_original>
